<compile_context>
chip_gen: v7x
topology: tpu7x:2x2x1
jax: 0.10.0
libtpu: 0.0.40
codegen_flags: <defaults>
</compile_context>

<pallas_src>
import jax
import jax.numpy as jnp
import numpy as np
from jax.experimental import pallas as pl
from jax.experimental.pallas import tpu as pltpu


def bottleneck_kernel(x_ref, w1_ref, b1_ref, w2_ref, b2_ref, w3_ref, b3_ref,
                      out_ref):
    """One image (NHWC) per grid step.

    x_ref  : (H, W, Cin)    bf16 input image
    w1_ref : (Cin, Pp)      bf16 conv1 1x1, bn1 scale folded, zero-padded cols
    w2_ref : (3, 3*Pp, Pp)  bf16 conv2 taps; slab [ky] has rows (kx, cin)
    w3_ref : (Pp, Cout)     bf16 conv3 1x1, bn3 scale folded, zero-padded rows
    b*_ref : (1, C)         f32 folded eval-mode BatchNorm bias
    out_ref: (H, W, Cout)   bf16
    """
    H, W, Cin = x_ref.shape
    Pp = w1_ref.shape[1]
    Cout = w3_ref.shape[1]

    x2d = x_ref[...].reshape(H * W, Cin)                       # bf16

    # ---- conv1 (1x1) + bn1 + relu ----
    a1 = jnp.dot(x2d, w1_ref[...], preferred_element_type=jnp.float32)
    t1 = jnp.maximum(a1 + b1_ref[...], 0.0)
    t1 = t1.astype(jnp.bfloat16).reshape(H, W, Pp)

    # ---- conv2 (3x3, stride=1, pad=1) + bn2 + relu ----
    # y-padding: two zero rows (outer-dim concat, no relayout).
    zrow = jnp.zeros((1, W, Pp), jnp.bfloat16)
    t1p = jnp.concatenate([zrow, t1, zrow], axis=0)            # (H+2, W, Pp)
    # x-padding + dx taps: lane-concat of three 128-aligned Pp blocks.
    zcol = jnp.zeros((H + 2, 1, Pp), jnp.bfloat16)
    t1dx = jnp.concatenate(
        [jnp.concatenate([zcol, t1p[:, :W - 1, :]], axis=1),   # column x-1
         t1p,                                                  # column x
         jnp.concatenate([t1p[:, 1:, :], zcol], axis=1)],      # column x+1
        axis=2)                                                # (H+2, W, 3Pp)
    # dy taps: three accumulating matmuls over row-offset slices of t1dx
    # (outer-dim slices only; no 9P slab is materialized).
    a2 = jnp.zeros((H * W, Pp), jnp.float32)
    for dy in range(3):                                        # static unroll
        lhs = t1dx[dy:dy + H].reshape(H * W, 3 * Pp)
        a2 = a2 + jnp.dot(lhs, w2_ref[dy], preferred_element_type=jnp.float32)
    t2 = jnp.maximum(a2 + b2_ref[...], 0.0).astype(jnp.bfloat16)

    # ---- conv3 (1x1) + bn3 + residual add + relu (f32 epilogue) ----
    a3 = jnp.dot(t2, w3_ref[...], preferred_element_type=jnp.float32)
    y = a3 + b3_ref[...] + x2d.astype(jnp.float32)             # Cin == Cout
    out_ref[...] = jnp.maximum(y, 0.0).astype(out_ref.dtype).reshape(H, W, Cout)


def _fold_bn(gamma, beta, mean, var, eps=1e-5):
    scale = gamma / jnp.sqrt(var + eps)
    bias = beta - mean * scale
    return scale, bias


def bottleneck_forward_nhwc(x_nhwc, params):
    """Core NHWC forward.  params: torch-shaped (OIHW) conv weights + BN stats."""
    N, H, W, Cin = x_nhwc.shape
    P = params["w1"].shape[0]                 # planes
    Cout = 4 * P
    assert Cin == Cout, "stride=1 / downsample=None requires inplanes == planes*4"

    # Pad "planes" up to a multiple of the 128-lane width so every lane-axis
    # concat is vreg-aligned and the MXU output width is filled.  Padded
    # channels (zero weight columns/rows + zero bias) stay exactly zero.
    Pp = ((P + 127) // 128) * 128

    s1, b1 = _fold_bn(params["g1"], params["be1"], params["m1"], params["v1"])
    s2, b2 = _fold_bn(params["g2"], params["be2"], params["m2"], params["v2"])
    s3, b3 = _fold_bn(params["g3"], params["be3"], params["m3"], params["v3"])

    # conv1: OIHW (P, Cin, 1, 1) -> (Cin, Pp); bn1 scale folded into columns.
    w1m = jnp.zeros((Cin, Pp), jnp.float32)
    w1m = w1m.at[:, :P].set(params["w1"][:, :, 0, 0].T * s1[None, :])
    w1m = w1m.astype(jnp.bfloat16)
    b1p = jnp.zeros((1, Pp), jnp.float32).at[0, :P].set(b1)

    # conv2: OIHW (P, P, 3, 3) -> (3, 3*Pp, Pp); slab [ky] rows are (kx, cin),
    # bn2 scale folded into output columns.
    w2_hwio = jnp.transpose(params["w2"], (2, 3, 1, 0))        # (3,3,P,P) [ky,kx,i,o]
    w2p = jnp.zeros((3, 3, Pp, Pp), jnp.float32)
    w2p = w2p.at[:, :, :P, :P].set(w2_hwio * s2[None, None, None, :])
    w2m = w2p.reshape(3, 3 * Pp, Pp).astype(jnp.bfloat16)
    b2p = jnp.zeros((1, Pp), jnp.float32).at[0, :P].set(b2)

    # conv3: OIHW (Cout, P, 1, 1) -> (Pp, Cout); bn3 scale folded into columns.
    w3m = jnp.zeros((Pp, Cout), jnp.float32)
    w3m = w3m.at[:P, :].set(params["w3"][:, :, 0, 0].T * s3[None, :])
    w3m = w3m.astype(jnp.bfloat16)
    b3p = b3.reshape(1, Cout).astype(jnp.float32)

    x_bf = x_nhwc.astype(jnp.bfloat16)        # bf16 activation I/O

    out_nhwc = pl.pallas_call(
        bottleneck_kernel,
        out_shape=jax.ShapeDtypeStruct((N, H, W, Cout), jnp.bfloat16),
        grid_spec=pltpu.PrefetchScalarGridSpec(
            num_scalar_prefetch=0,
            grid=(N,),                        # one whole image per step
            in_specs=[
                pl.BlockSpec((None, H, W, Cin), lambda n: (n, 0, 0, 0)),
                pl.BlockSpec((Cin, Pp), lambda n: (0, 0)),
                pl.BlockSpec((1, Pp), lambda n: (0, 0)),
                pl.BlockSpec((3, 3 * Pp, Pp), lambda n: (0, 0, 0)),
                pl.BlockSpec((1, Pp), lambda n: (0, 0)),
                pl.BlockSpec((Pp, Cout), lambda n: (0, 0)),
                pl.BlockSpec((1, Cout), lambda n: (0, 0)),
            ],
            out_specs=pl.BlockSpec((None, H, W, Cout), lambda n: (n, 0, 0, 0)),
        ),
        compiler_params=pltpu.CompilerParams(
            dimension_semantics=("parallel",),   # batch axis: megacore + pipeline
            # Whole-image tiles at ResNet bottleneck sizes (<=56x56) stay a few
            # MiB per step; 32 MiB scoped VMEM is safe on every generation
            # (v7x physical VMEM is 64 MiB).
            vmem_limit_bytes=32 * 1024 * 1024),
    )(x_bf, w1m, b1p, w2m, b2p, w3m, b3p)
    return out_nhwc


def bottleneck_forward(x_nchw, params):
    """PyTorch-style NCHW boundary wrapper (transposes are boundary-only)."""
    x_nhwc = jnp.transpose(x_nchw, (0, 2, 3, 1))
    out_nhwc = bottleneck_forward_nhwc(x_nhwc, params)
    return jnp.transpose(out_nhwc, (0, 3, 1, 2))


def bottleneck_reference(x_nchw, params):
    """Pure-JAX f32 reference (lax.conv, HIGHEST precision) for checking."""
    dn = ("NHWC", "HWIO", "NHWC")
    prec = jax.lax.Precision.HIGHEST
    x = jnp.transpose(x_nchw, (0, 2, 3, 1)).astype(jnp.float32)

    s1, b1 = _fold_bn(params["g1"], params["be1"], params["m1"], params["v1"])
    s2, b2 = _fold_bn(params["g2"], params["be2"], params["m2"], params["v2"])
    s3, b3 = _fold_bn(params["g3"], params["be3"], params["m3"], params["v3"])

    w1_hwio = jnp.transpose(params["w1"], (2, 3, 1, 0))
    w2_hwio = jnp.transpose(params["w2"], (2, 3, 1, 0))
    w3_hwio = jnp.transpose(params["w3"], (2, 3, 1, 0))

    t = jax.lax.conv_general_dilated(x, w1_hwio, (1, 1), "VALID",
                                     dimension_numbers=dn, precision=prec)
    t = jnp.maximum(t * s1 + b1, 0.0)
    t = jax.lax.conv_general_dilated(t, w2_hwio, (1, 1), "SAME",
                                     dimension_numbers=dn, precision=prec)
    t = jnp.maximum(t * s2 + b2, 0.0)
    t = jax.lax.conv_general_dilated(t, w3_hwio, (1, 1), "VALID",
                                     dimension_numbers=dn, precision=prec)
    t = t * s3 + b3
    out = jnp.maximum(t + x, 0.0)
    return jnp.transpose(out, (0, 3, 1, 2))


if __name__ == "__main__":
    # Small but lane-friendly config: planes=32 -> inplanes = Cout = 128,
    # N=2, 16x16 spatial (smaller than any real ResNet bottleneck stage).
    planes, inplanes = 32, 128
    N, H, W = 2, 16, 16
    Cout = 4 * planes

    key = jax.random.PRNGKey(0)
    ks = jax.random.split(key, 16)

    params = {
        # torch-shaped conv weights (OIHW), no bias
        "w1": 0.1 * jax.random.normal(ks[0], (planes, inplanes, 1, 1), jnp.float32),
        "w2": 0.1 * jax.random.normal(ks[1], (planes, planes, 3, 3), jnp.float32),
        "w3": 0.1 * jax.random.normal(ks[2], (Cout, planes, 1, 1), jnp.float32),
        # BatchNorm (eval mode) affine params + running stats
        "g1": 1.0 + 0.1 * jax.random.normal(ks[3], (planes,), jnp.float32),
        "be1": 0.1 * jax.random.normal(ks[4], (planes,), jnp.float32),
        "m1": 0.1 * jax.random.normal(ks[5], (planes,), jnp.float32),
        "v1": jax.random.uniform(ks[6], (planes,), jnp.float32, 0.5, 1.5),
        "g2": 1.0 + 0.1 * jax.random.normal(ks[7], (planes,), jnp.float32),
        "be2": 0.1 * jax.random.normal(ks[8], (planes,), jnp.float32),
        "m2": 0.1 * jax.random.normal(ks[9], (planes,), jnp.float32),
        "v2": jax.random.uniform(ks[10], (planes,), jnp.float32, 0.5, 1.5),
        "g3": 1.0 + 0.1 * jax.random.normal(ks[11], (Cout,), jnp.float32),
        "be3": 0.1 * jax.random.normal(ks[12], (Cout,), jnp.float32),
        "m3": 0.1 * jax.random.normal(ks[13], (Cout,), jnp.float32),
        "v3": jax.random.uniform(ks[14], (Cout,), jnp.float32, 0.5, 1.5),
    }

    x = jax.random.normal(ks[15], (N, inplanes, H, W), jnp.float32)  # NCHW like PyTorch

    out = bottleneck_forward(x, params)
    out = jax.block_until_ready(out)

    ref = bottleneck_reference(x, params)
    # Tolerance sized for bf16 activation I/O + bf16 (scale-folded) weights with
    # f32 accumulation vs. the f32 HIGHEST-precision reference.
    np.testing.assert_allclose(np.asarray(out.astype(jnp.float32)),
                               np.asarray(ref), rtol=4e-2, atol=4e-2)

    print("KERNEL_OK")
</pallas_src>

<mosaic_0001>
module attributes {stable_mosaic.version = 11 : i64} {
  func.func @bottleneck_kernel(%arg0: i32, %arg1: memref<1x16x16x128xbf16, #tpu.memory_space<vmem>>, %arg2: memref<128x128xbf16, #tpu.memory_space<vmem>>, %arg3: memref<1x128xf32, #tpu.memory_space<vmem>>, %arg4: memref<3x384x128xbf16, #tpu.memory_space<vmem>>, %arg5: memref<1x128xf32, #tpu.memory_space<vmem>>, %arg6: memref<128x128xbf16, #tpu.memory_space<vmem>>, %arg7: memref<1x128xf32, #tpu.memory_space<vmem>>, %arg8: memref<1x16x16x128xbf16, #tpu.memory_space<vmem>>) attributes {dimension_semantics = [#tpu.dimension_semantics<parallel>], iteration_bounds = array<i64: 2>, scalar_prefetch = 0 : i64, scratch_operands = 0 : i64, tpu.core_type = #tpu.core_type<tc>, window_params = [{transform_indices = @transform_0, window_bounds = array<i64: 1, 16, 16, 128>}, {pipeline_mode = #tpu.pipeline_mode<synchronous>, transform_indices = @transform_1, window_bounds = array<i64: 128, 128>}, {pipeline_mode = #tpu.pipeline_mode<synchronous>, transform_indices = @transform_2, window_bounds = array<i64: 1, 128>}, {pipeline_mode = #tpu.pipeline_mode<synchronous>, transform_indices = @transform_3, window_bounds = array<i64: 3, 384, 128>}, {pipeline_mode = #tpu.pipeline_mode<synchronous>, transform_indices = @transform_4, window_bounds = array<i64: 1, 128>}, {pipeline_mode = #tpu.pipeline_mode<synchronous>, transform_indices = @transform_5, window_bounds = array<i64: 128, 128>}, {pipeline_mode = #tpu.pipeline_mode<synchronous>, transform_indices = @transform_6, window_bounds = array<i64: 1, 128>}, {transform_indices = @transform_7, window_bounds = array<i64: 1, 16, 16, 128>}]} {
    %c0 = arith.constant 0 : index
    %c0_0 = arith.constant 0 : index
    %c0_1 = arith.constant 0 : index
    %c0_2 = arith.constant 0 : index
    %0 = vector.load %arg1[%c0, %c0_0, %c0_1, %c0_2] : memref<1x16x16x128xbf16, #tpu.memory_space<vmem>>, vector<1x16x16x128xbf16>
    %1 = vector.shape_cast %0 : vector<1x16x16x128xbf16> to vector<16x16x128xbf16>
    %2 = vector.shape_cast %1 : vector<16x16x128xbf16> to vector<256x128xbf16>
    %c0_3 = arith.constant 0 : index
    %c0_4 = arith.constant 0 : index
    %3 = vector.load %arg2[%c0_3, %c0_4] : memref<128x128xbf16, #tpu.memory_space<vmem>>, vector<128x128xbf16>
    %cst = arith.constant dense<0.000000e+00> : vector<256x128xf32>
    %4 = tpu.matmul %2, %3, %cst {dimension_numbers = #tpu.dot_dimension_numbers<[1], [0], [0], [1], [0, 0, 1, 1], [], []>} : vector<256x128xbf16>, vector<128x128xbf16>, vector<256x128xf32> -> vector<256x128xf32>
    %c0_5 = arith.constant 0 : index
    %c0_6 = arith.constant 0 : index
    %5 = vector.load %arg3[%c0_5, %c0_6] : memref<1x128xf32, #tpu.memory_space<vmem>>, vector<1x128xf32>
    %6 = vector.broadcast %5 : vector<1x128xf32> to vector<256x128xf32>
    %7 = arith.addf %4, %6 : vector<256x128xf32>
    %cst_7 = arith.constant 0.000000e+00 : f32
    %8 = vector.broadcast %cst_7 : f32 to vector<256x128xf32>
    %9 = arith.maximumf %7, %8 : vector<256x128xf32>
    %10 = arith.truncf %9 : vector<256x128xf32> to vector<256x128xbf16>
    %11 = vector.shape_cast %10 : vector<256x128xbf16> to vector<16x16x128xbf16>
    %cst_8 = arith.constant 0.000000e+00 : bf16
    %12 = vector.broadcast %cst_8 : bf16 to vector<1x16x128xbf16>
    %13 = tpu.concatenate %12, %11, %12 in 0 : vector<1x16x128xbf16>, vector<16x16x128xbf16>, vector<1x16x128xbf16> -> vector<18x16x128xbf16>
    %cst_9 = arith.constant 0.000000e+00 : bf16
    %14 = vector.broadcast %cst_9 : bf16 to vector<18x1x128xbf16>
    %15 = vector.extract_strided_slice %13 {offsets = [0, 0, 0], sizes = [18, 15, 128], strides = [1, 1, 1]} : vector<18x16x128xbf16> to vector<18x15x128xbf16>
    %16 = tpu.concatenate %14, %15 in 1 : vector<18x1x128xbf16>, vector<18x15x128xbf16> -> vector<18x16x128xbf16>
    %17 = vector.extract_strided_slice %13 {offsets = [0, 1, 0], sizes = [18, 15, 128], strides = [1, 1, 1]} : vector<18x16x128xbf16> to vector<18x15x128xbf16>
    %18 = tpu.concatenate %17, %14 in 1 : vector<18x15x128xbf16>, vector<18x1x128xbf16> -> vector<18x16x128xbf16>
    %19 = tpu.concatenate %16, %13, %18 in 2 : vector<18x16x128xbf16>, vector<18x16x128xbf16>, vector<18x16x128xbf16> -> vector<18x16x384xbf16>
    %cst_10 = arith.constant 0.000000e+00 : f32
    %20 = vector.broadcast %cst_10 : f32 to vector<256x128xf32>
    %21 = vector.extract_strided_slice %19 {offsets = [0, 0, 0], sizes = [16, 16, 384], strides = [1, 1, 1]} : vector<18x16x384xbf16> to vector<16x16x384xbf16>
    %22 = vector.shape_cast %21 : vector<16x16x384xbf16> to vector<256x384xbf16>
    %c0_11 = arith.constant 0 : index
    %c0_12 = arith.constant 0 : index
    %c0_13 = arith.constant 0 : index
    %23 = vector.load %arg4[%c0_11, %c0_12, %c0_13] : memref<3x384x128xbf16, #tpu.memory_space<vmem>>, vector<1x384x128xbf16>
    %24 = vector.shape_cast %23 : vector<1x384x128xbf16> to vector<384x128xbf16>
    %cst_14 = arith.constant dense<0.000000e+00> : vector<256x128xf32>
    %25 = tpu.matmul %22, %24, %cst_14 {dimension_numbers = #tpu.dot_dimension_numbers<[1], [0], [0], [1], [0, 0, 1, 1], [], []>} : vector<256x384xbf16>, vector<384x128xbf16>, vector<256x128xf32> -> vector<256x128xf32>
    %26 = arith.addf %20, %25 : vector<256x128xf32>
    %27 = vector.extract_strided_slice %19 {offsets = [1, 0, 0], sizes = [16, 16, 384], strides = [1, 1, 1]} : vector<18x16x384xbf16> to vector<16x16x384xbf16>
    %28 = vector.shape_cast %27 : vector<16x16x384xbf16> to vector<256x384xbf16>
    %c1 = arith.constant 1 : index
    %c0_15 = arith.constant 0 : index
    %c0_16 = arith.constant 0 : index
    %29 = vector.load %arg4[%c1, %c0_15, %c0_16] : memref<3x384x128xbf16, #tpu.memory_space<vmem>>, vector<1x384x128xbf16>
    %30 = vector.shape_cast %29 : vector<1x384x128xbf16> to vector<384x128xbf16>
    %cst_17 = arith.constant dense<0.000000e+00> : vector<256x128xf32>
    %31 = tpu.matmul %28, %30, %cst_17 {dimension_numbers = #tpu.dot_dimension_numbers<[1], [0], [0], [1], [0, 0, 1, 1], [], []>} : vector<256x384xbf16>, vector<384x128xbf16>, vector<256x128xf32> -> vector<256x128xf32>
    %32 = arith.addf %26, %31 : vector<256x128xf32>
    %33 = vector.extract_strided_slice %19 {offsets = [2, 0, 0], sizes = [16, 16, 384], strides = [1, 1, 1]} : vector<18x16x384xbf16> to vector<16x16x384xbf16>
    %34 = vector.shape_cast %33 : vector<16x16x384xbf16> to vector<256x384xbf16>
    %c2 = arith.constant 2 : index
    %c0_18 = arith.constant 0 : index
    %c0_19 = arith.constant 0 : index
    %35 = vector.load %arg4[%c2, %c0_18, %c0_19] : memref<3x384x128xbf16, #tpu.memory_space<vmem>>, vector<1x384x128xbf16>
    %36 = vector.shape_cast %35 : vector<1x384x128xbf16> to vector<384x128xbf16>
    %cst_20 = arith.constant dense<0.000000e+00> : vector<256x128xf32>
    %37 = tpu.matmul %34, %36, %cst_20 {dimension_numbers = #tpu.dot_dimension_numbers<[1], [0], [0], [1], [0, 0, 1, 1], [], []>} : vector<256x384xbf16>, vector<384x128xbf16>, vector<256x128xf32> -> vector<256x128xf32>
    %38 = arith.addf %32, %37 : vector<256x128xf32>
    %c0_21 = arith.constant 0 : index
    %c0_22 = arith.constant 0 : index
    %39 = vector.load %arg5[%c0_21, %c0_22] : memref<1x128xf32, #tpu.memory_space<vmem>>, vector<1x128xf32>
    %40 = vector.broadcast %39 : vector<1x128xf32> to vector<256x128xf32>
    %41 = arith.addf %38, %40 : vector<256x128xf32>
    %cst_23 = arith.constant 0.000000e+00 : f32
    %42 = vector.broadcast %cst_23 : f32 to vector<256x128xf32>
    %43 = arith.maximumf %41, %42 : vector<256x128xf32>
    %44 = arith.truncf %43 : vector<256x128xf32> to vector<256x128xbf16>
    %c0_24 = arith.constant 0 : index
    %c0_25 = arith.constant 0 : index
    %45 = vector.load %arg6[%c0_24, %c0_25] : memref<128x128xbf16, #tpu.memory_space<vmem>>, vector<128x128xbf16>
    %cst_26 = arith.constant dense<0.000000e+00> : vector<256x128xf32>
    %46 = tpu.matmul %44, %45, %cst_26 {dimension_numbers = #tpu.dot_dimension_numbers<[1], [0], [0], [1], [0, 0, 1, 1], [], []>} : vector<256x128xbf16>, vector<128x128xbf16>, vector<256x128xf32> -> vector<256x128xf32>
    %c0_27 = arith.constant 0 : index
    %c0_28 = arith.constant 0 : index
    %47 = vector.load %arg7[%c0_27, %c0_28] : memref<1x128xf32, #tpu.memory_space<vmem>>, vector<1x128xf32>
    %48 = vector.broadcast %47 : vector<1x128xf32> to vector<256x128xf32>
    %49 = arith.addf %46, %48 : vector<256x128xf32>
    %50 = arith.extf %2 : vector<256x128xbf16> to vector<256x128xf32>
    %51 = arith.addf %49, %50 : vector<256x128xf32>
    %cst_29 = arith.constant 0.000000e+00 : f32
    %52 = vector.broadcast %cst_29 : f32 to vector<256x128xf32>
    %53 = arith.maximumf %51, %52 : vector<256x128xf32>
    %54 = arith.truncf %53 : vector<256x128xf32> to vector<256x128xbf16>
    %55 = vector.shape_cast %54 : vector<256x128xbf16> to vector<16x16x128xbf16>
    %c0_30 = arith.constant 0 : index
    %c0_31 = arith.constant 0 : index
    %c0_32 = arith.constant 0 : index
    %c0_33 = arith.constant 0 : index
    %56 = vector.load %arg8[%c0_30, %c0_31, %c0_32, %c0_33] : memref<1x16x16x128xbf16, #tpu.memory_space<vmem>>, vector<1x16x16x128xbf16>
    %57 = vector.shape_cast %56 : vector<1x16x16x128xbf16> to vector<16x16x128xbf16>
    %58 = vector.shape_cast %55 : vector<16x16x128xbf16> to vector<1x16x16x128xbf16>
    tpu.vector_store %arg8[%c0_30, %c0_31, %c0_32, %c0_33], %58 {strides = array<i32>} : memref<1x16x16x128xbf16, #tpu.memory_space<vmem>>, vector<1x16x16x128xbf16>,
    return
  }
  func.func @transform_0(%arg0: i32) -> (i32, i32, i32, i32) {
    %c0_i32 = arith.constant 0 : i32
    %c0_i32_0 = arith.constant 0 : i32
    %c0_i32_1 = arith.constant 0 : i32
    %c0_i32_2 = arith.constant 0 : i32
    return %arg0, %c0_i32, %c0_i32_0, %c0_i32_1 : i32, i32, i32, i32
  }
  func.func @transform_1(%arg0: i32) -> (i32, i32) {
    %c0_i32 = arith.constant 0 : i32
    %c0_i32_0 = arith.constant 0 : i32
    %c0_i32_1 = arith.constant 0 : i32
    return %c0_i32, %c0_i32_0 : i32, i32
  }
  func.func @transform_2(%arg0: i32) -> (i32, i32) {
    %c0_i32 = arith.constant 0 : i32
    %c0_i32_0 = arith.constant 0 : i32
    %c0_i32_1 = arith.constant 0 : i32
    return %c0_i32, %c0_i32_0 : i32, i32
  }
  func.func @transform_3(%arg0: i32) -> (i32, i32, i32) {
    %c0_i32 = arith.constant 0 : i32
    %c0_i32_0 = arith.constant 0 : i32
    %c0_i32_1 = arith.constant 0 : i32
    %c0_i32_2 = arith.constant 0 : i32
    return %c0_i32, %c0_i32_0, %c0_i32_1 : i32, i32, i32
  }
  func.func @transform_4(%arg0: i32) -> (i32, i32) {
    %c0_i32 = arith.constant 0 : i32
    %c0_i32_0 = arith.constant 0 : i32
    %c0_i32_1 = arith.constant 0 : i32
    return %c0_i32, %c0_i32_0 : i32, i32
  }
  func.func @transform_5(%arg0: i32) -> (i32, i32) {
    %c0_i32 = arith.constant 0 : i32
    %c0_i32_0 = arith.constant 0 : i32
    %c0_i32_1 = arith.constant 0 : i32
    return %c0_i32, %c0_i32_0 : i32, i32
  }
  func.func @transform_6(%arg0: i32) -> (i32, i32) {
    %c0_i32 = arith.constant 0 : i32
    %c0_i32_0 = arith.constant 0 : i32
    %c0_i32_1 = arith.constant 0 : i32
    return %c0_i32, %c0_i32_0 : i32, i32
  }
  func.func @transform_7(%arg0: i32) -> (i32, i32, i32, i32) {
    %c0_i32 = arith.constant 0 : i32
    %c0_i32_0 = arith.constant 0 : i32
    %c0_i32_1 = arith.constant 0 : i32
    %c0_i32_2 = arith.constant 0 : i32
    return %arg0, %c0_i32, %c0_i32_0, %c0_i32_1 : i32, i32, i32, i32
  }
}

</mosaic_0001>

<llo_original>
// kernel: tpu_custom_call.1
$region0: #{tpu_custom_call.1}
  #allocation0 [shape = 'u32[]', space=smem, size = 0x4, offset = 0x4, fixed_abs, tag = 'smem constant byte address 0x4 - core index']
  #allocation1 [shape = 'u32[144,128]{1,0:T(1,128)}', space=vmem, size = 0x12000, scoped, tag = 'internal scratch']
  %s0 = inlined_call_operand.hbm [shape: bf16[2,16,16,128], index: 0, kind: input, shape index: {}]
  %s1 = inlined_call_operand.hbm [shape: bf16[128,128], index: 1, kind: input, shape index: {}]
  %s2 = inlined_call_operand.vmem [shape: f32[1,128], index: 2, kind: input, shape index: {}]
  %s3 = inlined_call_operand.hbm [shape: bf16[3,384,128], index: 3, kind: input, shape index: {}]
  %s4 = inlined_call_operand.vmem [shape: f32[1,128], index: 4, kind: input, shape index: {}]
  %s5 = inlined_call_operand.hbm [shape: bf16[128,128], index: 5, kind: input, shape index: {}]
  %s6 = inlined_call_operand.vmem [shape: f32[1,128], index: 6, kind: input, shape index: {}]
  %s7 = inlined_call_operand.hbm [shape: bf16[2,16,16,128], index: 7, kind: output, shape index: {}]
  %s8 = sld [smem:[#allocation0]]
  $region77: #{tpu_custom_call.1} parent=0
    _
  %s10 = ssub.s32 1, %s8
  %s11 = scalar_select 0, %s10, %s8
  $region1: #{tpu_custom_call.1} parent=0
    #allocation2 [shape = 'u8[131072]{0}', space=vmem, size = 0x20000, scoped, tag = 'input window, operand 0']
    #allocation3 [shape = 's32[2]{0}', space=sflag, size = 0x8, scoped, tag = 'scoped memory for tpu_custom_call.1']
    #allocation4 [shape = 's32[2]{0}', space=sflag, size = 0x8, scoped, tag = 'scoped memory for tpu_custom_call.1']
    #allocation5 [shape = 'u8[32768]{0}', space=vmem, size = 0x8000, scoped, tag = 'input window, operand 1, single buffered']
    #allocation6 [shape = 's32[1]{0}', space=sflag, size = 0x4, scoped, tag = 'scoped memory for tpu_custom_call.1']
    #allocation7 [shape = 'u8[294912]{0}', space=vmem, size = 0x48000, scoped, tag = 'input window, operand 3, single buffered']
    #allocation8 [shape = 'u8[32768]{0}', space=vmem, size = 0x8000, scoped, tag = 'input window, operand 5, single buffered']
    #allocation9 [shape = 's32[1]{0}', space=sflag, size = 0x4, scoped, tag = 'scoped memory for tpu_custom_call.1']
    #allocation10 [shape = 'u8[131072]{0}', space=vmem, size = 0x20000, scoped, tag = 'output window, operand 0']
    %12 = vsyncpa [#allocation3], 0
    %s13 = scalar_lea.sflag [#allocation3], 1
    %14 = vsyncpa %s13, 0
    %15 = vsyncpa [#allocation6], 0
    %16 = vsyncpa [#allocation9], 0
    %17 = vsyncpa [#allocation4], 0
    %s18 = scalar_lea.sflag [#allocation4], 1
    %19 = vsyncpa %s18, 0
    loop: start=0, step=1, limit=4
    $region2: #{tpu_custom_call.1} parent=1 // loop_pre_header
      _
    $region3: #{tpu_custom_call.1} parent=1 // loop_header
      %s21 = sphi 0, %s25
      %p22 = scmp.ge.s32.totalorder %s21, 4
      %s31 = sphi 0, %s33
      %s34 = sphi 0, %s31
      %s35 = sphi 0, %s34
      %s51 = sphi 0, %s35
      %s55 = sphi 0, %s55
      %s57 = sphi 0, %s55
      %s58 = sphi 0, %s57
      %s72 = sphi 0, %s58
      %s76 = sphi 0, %s76
      %s78 = sphi 0, %s76
      %s79 = sphi 0, %s78
      %s93 = sphi 0, %s79
      %s97 = sphi 0, %s97
      %s99 = sphi 0, %s97
      %s100 = sphi 0, %s99
      %s114 = sphi 0, %s100
      %s118 = sphi 0, %s118
      %s120 = sphi 0, %s118
      %s121 = sphi 0, %s120
      %s135 = sphi 0, %s121
      %s139 = sphi 0, %s139
      %s141 = sphi 0, %s139
      %s142 = sphi 0, %s141
      %s156 = sphi 0, %s142
      %s160 = sphi 0, %s160
      %s162 = sphi 0, %s160
      %s163 = sphi 0, %s162
      %s177 = sphi 0, %s163
      %s183 = sphi 0, %s185
      %s186 = sphi 0, %s183
      %s187 = sphi 0, %s186
      %s203 = sphi 0, %s187
    $region4: #{tpu_custom_call.1} parent=1 // loop_header_branch
      %24 = sbr.rel (%p22) target = $region8
    $region5: #{tpu_custom_call.1} parent=1 // loop_body
      %s26 = ssub.s32 %s21, 1
      %s27 = ssub.s32 %s21, 2
      %s28 = sadd.s32 %s21, 1
      %s29 = ssub.s32 %s21, %s28
      %p30 = scmp.eq.s32.totalorder %s29, 0
      %s32 = sadd.s32 %s31, 1
      %s33 = scalar_select %p30, %s31, %s32
      %p36 = pneg %p30
      %p37 = scmp.eq.s32.totalorder %s21, 1
      %p38 = por %p36, %p37
      %p39 = scmp.ne.s32.totalorder %s31, %s34
      %p40 = scmp.eq.s32.totalorder %s21, 0
      %p41 = por %p39, %p40
      %p42 = scmp.ne.s32.totalorder %s31, %s34
      %p43 = scmp.eq.s32.totalorder %s26, 1
      %p44 = por %p42, %p43
      %p45 = scmp.ne.s32.totalorder %s34, %s35
      %p46 = scmp.eq.s32.totalorder %s26, 0
      %p47 = por %p45, %p46
      %p48 = scmp.ne.s32.totalorder %s34, %s35
      %p49 = scmp.eq.s32.totalorder %s27, 1
      %p50 = por %p48, %p49
      %p52 = scmp.ne.s32.totalorder %s35, %s51
      %p53 = scmp.eq.s32.totalorder %s27, 0
      %p54 = por %p52, %p53
      %s56 = sadd.s32 %s55, 1
      %p59 = scmp.eq.s32.totalorder %s21, 1
      %p60 = scmp.ne.s32.totalorder %s55, %s57
      %p61 = scmp.eq.s32.totalorder %s21, 0
      %p62 = por %p60, %p61
      %p63 = scmp.ne.s32.totalorder %s55, %s57
      %p64 = scmp.eq.s32.totalorder %s26, 1
      %p65 = por %p63, %p64
      %p66 = scmp.ne.s32.totalorder %s57, %s58
      %p67 = scmp.eq.s32.totalorder %s26, 0
      %p68 = por %p66, %p67
      %p69 = scmp.ne.s32.totalorder %s57, %s58
      %p70 = scmp.eq.s32.totalorder %s27, 1
      %p71 = por %p69, %p70
      %p73 = scmp.ne.s32.totalorder %s58, %s72
      %p74 = scmp.eq.s32.totalorder %s27, 0
      %p75 = por %p73, %p74
      %s77 = sadd.s32 %s76, 1
      %p80 = scmp.eq.s32.totalorder %s21, 1
      %p81 = scmp.ne.s32.totalorder %s76, %s78
      %p82 = scmp.eq.s32.totalorder %s21, 0
      %p83 = por %p81, %p82
      %p84 = scmp.ne.s32.totalorder %s76, %s78
      %p85 = scmp.eq.s32.totalorder %s26, 1
      %p86 = por %p84, %p85
      %p87 = scmp.ne.s32.totalorder %s78, %s79
      %p88 = scmp.eq.s32.totalorder %s26, 0
      %p89 = por %p87, %p88
      %p90 = scmp.ne.s32.totalorder %s78, %s79
      %p91 = scmp.eq.s32.totalorder %s27, 1
      %p92 = por %p90, %p91
      %p94 = scmp.ne.s32.totalorder %s79, %s93
      %p95 = scmp.eq.s32.totalorder %s27, 0
      %p96 = por %p94, %p95
      %s98 = sadd.s32 %s97, 1
      %p101 = scmp.eq.s32.totalorder %s21, 1
      %p102 = scmp.ne.s32.totalorder %s97, %s99
      %p103 = scmp.eq.s32.totalorder %s21, 0
      %p104 = por %p102, %p103
      %p105 = scmp.ne.s32.totalorder %s97, %s99
      %p106 = scmp.eq.s32.totalorder %s26, 1
      %p107 = por %p105, %p106
      %p108 = scmp.ne.s32.totalorder %s99, %s100
      %p109 = scmp.eq.s32.totalorder %s26, 0
      %p110 = por %p108, %p109
      %p111 = scmp.ne.s32.totalorder %s99, %s100
      %p112 = scmp.eq.s32.totalorder %s27, 1
      %p113 = por %p111, %p112
      %p115 = scmp.ne.s32.totalorder %s100, %s114
      %p116 = scmp.eq.s32.totalorder %s27, 0
      %p117 = por %p115, %p116
      %s119 = sadd.s32 %s118, 1
      %p122 = scmp.eq.s32.totalorder %s21, 1
      %p123 = scmp.ne.s32.totalorder %s118, %s120
      %p124 = scmp.eq.s32.totalorder %s21, 0
      %p125 = por %p123, %p124
      %p126 = scmp.ne.s32.totalorder %s118, %s120
      %p127 = scmp.eq.s32.totalorder %s26, 1
      %p128 = por %p126, %p127
      %p129 = scmp.ne.s32.totalorder %s120, %s121
      %p130 = scmp.eq.s32.totalorder %s26, 0
      %p131 = por %p129, %p130
      %p132 = scmp.ne.s32.totalorder %s120, %s121
      %p133 = scmp.eq.s32.totalorder %s27, 1
      %p134 = por %p132, %p133
      %p136 = scmp.ne.s32.totalorder %s121, %s135
      %p137 = scmp.eq.s32.totalorder %s27, 0
      %p138 = por %p136, %p137
      %s140 = sadd.s32 %s139, 1
      %p143 = scmp.eq.s32.totalorder %s21, 1
      %p144 = scmp.ne.s32.totalorder %s139, %s141
      %p145 = scmp.eq.s32.totalorder %s21, 0
      %p146 = por %p144, %p145
      %p147 = scmp.ne.s32.totalorder %s139, %s141
      %p148 = scmp.eq.s32.totalorder %s26, 1
      %p149 = por %p147, %p148
      %p150 = scmp.ne.s32.totalorder %s141, %s142
      %p151 = scmp.eq.s32.totalorder %s26, 0
      %p152 = por %p150, %p151
      %p153 = scmp.ne.s32.totalorder %s141, %s142
      %p154 = scmp.eq.s32.totalorder %s27, 1
      %p155 = por %p153, %p154
      %p157 = scmp.ne.s32.totalorder %s142, %s156
      %p158 = scmp.eq.s32.totalorder %s27, 0
      %p159 = por %p157, %p158
      %s161 = sadd.s32 %s160, 1
      %p164 = scmp.eq.s32.totalorder %s21, 1
      %p165 = scmp.ne.s32.totalorder %s160, %s162
      %p166 = scmp.eq.s32.totalorder %s21, 0
      %p167 = por %p165, %p166
      %p168 = scmp.ne.s32.totalorder %s160, %s162
      %p169 = scmp.eq.s32.totalorder %s26, 1
      %p170 = por %p168, %p169
      %p171 = scmp.ne.s32.totalorder %s162, %s163
      %p172 = scmp.eq.s32.totalorder %s26, 0
      %p173 = por %p171, %p172
      %p174 = scmp.ne.s32.totalorder %s162, %s163
      %p175 = scmp.eq.s32.totalorder %s27, 1
      %p176 = por %p174, %p175
      %p178 = scmp.ne.s32.totalorder %s163, %s177
      %p179 = scmp.eq.s32.totalorder %s27, 0
      %p180 = por %p178, %p179
      %s181 = ssub.s32 %s21, %s28
      %p182 = scmp.eq.s32.totalorder %s181, 0
      %s184 = sadd.s32 %s183, 1
      %s185 = scalar_select %p182, %s183, %s184
      %p188 = pneg %p182
      %p189 = scmp.eq.s32.totalorder %s21, 1
      %p190 = por %p188, %p189
      %p191 = scmp.ne.s32.totalorder %s183, %s186
      %p192 = scmp.eq.s32.totalorder %s21, 0
      %p193 = por %p191, %p192
      %p194 = scmp.ne.s32.totalorder %s183, %s186
      %p195 = scmp.eq.s32.totalorder %s26, 1
      %p196 = por %p194, %p195
      %p197 = scmp.ne.s32.totalorder %s186, %s187
      %p198 = scmp.eq.s32.totalorder %s26, 0
      %p199 = por %p197, %p198
      %p200 = scmp.ne.s32.totalorder %s186, %s187
      %p201 = scmp.eq.s32.totalorder %s27, 1
      %p202 = por %p200, %p201
      %p204 = scmp.ne.s32.totalorder %s187, %s203
      %p205 = scmp.eq.s32.totalorder %s27, 0
      %p206 = por %p204, %p205
      %p207 = scmp.le.s32.totalorder 1, %s21
      %p208 = scmp.lt.s32.totalorder %s21, 3
      %p209 = pnand %p207, %p208
      %p210 = pneg %p209
      // Predicated region
      $region9: #{tpu_custom_call.1} parent=5 // pred_check
        _
      $region10: #{tpu_custom_call.1} parent=5 // pred_check_branch
        %212 = sbr.rel (%p209) target = $region12
      $region11: #{tpu_custom_call.1} parent=5 // pred_region
        %s213 = ssub.s32 %s21, 1
        // Predicated region
        $region13: #{tpu_custom_call.1} parent=11 // pred_check
          %p214 = pneg %p68
        $region14: #{tpu_custom_call.1} parent=11 // pred_check_branch
          %216 = sbr.rel (%p214) target = $region16
        $region15: #{tpu_custom_call.1} parent=11 // pred_region
          %s218 = ssub.s32 1024, 1024
          %219 = vsyncadd [#allocation6], %s218
          %s220 = sshll.u32 [#allocation5], 4
          %s221 = int_to_ptr.vmem [resolvable:$true] %s220
          %226 = dma.hbm_to_vmem [thread:$0]  %s1, 1024, %s221, [#allocation6], 64, 64, 4
        $region16: #{tpu_custom_call.1} parent=11 // pred_fallthru
          _
        // Predicated region
        $region17: #{tpu_custom_call.1} parent=11 // pred_check
          %p227 = pneg %p89
        $region18: #{tpu_custom_call.1} parent=11 // pred_check_branch
          %229 = sbr.rel (%p227) target = $region20
        $region19: #{tpu_custom_call.1} parent=11 // pred_region
          _
        $region20: #{tpu_custom_call.1} parent=11 // pred_fallthru
          _
        // Predicated region
        $region21: #{tpu_custom_call.1} parent=11 // pred_check
          %p230 = pneg %p110
        $region22: #{tpu_custom_call.1} parent=11 // pred_check_branch
          %232 = sbr.rel (%p230) target = $region24
        $region23: #{tpu_custom_call.1} parent=11 // pred_region
          %s234 = ssub.s32 9216, 9216
          %235 = vsyncadd [#allocation6], %s234
          %s236 = sshll.u32 [#allocation7], 4
          %s237 = int_to_ptr.vmem [resolvable:$true] %s236
          %242 = dma.hbm_to_vmem [thread:$0]  %s3, 9216, %s237, [#allocation6], 64, 64, 4
        $region24: #{tpu_custom_call.1} parent=11 // pred_fallthru
          _
        // Predicated region
        $region25: #{tpu_custom_call.1} parent=11 // pred_check
          %p243 = pneg %p131
        $region26: #{tpu_custom_call.1} parent=11 // pred_check_branch
          %245 = sbr.rel (%p243) target = $region28
        $region27: #{tpu_custom_call.1} parent=11 // pred_region
          _
        $region28: #{tpu_custom_call.1} parent=11 // pred_fallthru
          _
        // Predicated region
        $region29: #{tpu_custom_call.1} parent=11 // pred_check
          %p246 = pneg %p152
        $region30: #{tpu_custom_call.1} parent=11 // pred_check_branch
          %248 = sbr.rel (%p246) target = $region32
        $region31: #{tpu_custom_call.1} parent=11 // pred_region
          %s250 = ssub.s32 1024, 1024
          %251 = vsyncadd [#allocation9], %s250
          %s252 = sshll.u32 [#allocation8], 4
          %s253 = int_to_ptr.vmem [resolvable:$true] %s252
          %258 = dma.hbm_to_vmem [thread:$0]  %s5, 1024, %s253, [#allocation9], 64, 64, 4
        $region32: #{tpu_custom_call.1} parent=11 // pred_fallthru
          _
        // Predicated region
        $region33: #{tpu_custom_call.1} parent=11 // pred_check
          %p259 = pneg %p173
        $region34: #{tpu_custom_call.1} parent=11 // pred_check_branch
          %261 = sbr.rel (%p259) target = $region36
        $region35: #{tpu_custom_call.1} parent=11 // pred_region
          _
        $region36: #{tpu_custom_call.1} parent=11 // pred_fallthru
          _
      $region12: #{tpu_custom_call.1} parent=5 // pred_fallthru
        _
      %p262 = scmp.lt.s32.totalorder %s21, 2
      // Predicated region
      $region37: #{tpu_custom_call.1} parent=5 // pred_check
        %p263 = pneg %p262
      $region38: #{tpu_custom_call.1} parent=5 // pred_check_branch
        %265 = sbr.rel (%p263) target = $region40
      $region39: #{tpu_custom_call.1} parent=5 // pred_region
        // Predicated region
        $region41: #{tpu_custom_call.1} parent=39 // pred_check
          %p266 = pneg %p41
        $region42: #{tpu_custom_call.1} parent=39 // pred_check_branch
          %268 = sbr.rel (%p266) target = $region44
        $region43: #{tpu_custom_call.1} parent=39 // pred_region
          %s269 = sand.u32 %s31, 1
          %s270 = scalar_lea.sflag [#allocation3], %s269
          %s271 = sand.u32 %s31, 1
          %s272 = smul.addr %s271, 128
          %s273 = scalar_lea.vmem [#allocation2], %s272
          %s275 = ssub.s32 2048, 2048
          %276 = vsyncadd %s270, %s275
          %s277 = smul.addr %s21, 32
          %s278 = smul.addr %s277, 64
          %s279 = scalar_lea.hbm %s0, %s278
          %s280 = sshll.u32 %s273, 4
          %s281 = int_to_ptr.vmem [resolvable:$true] %s280
          %286 = dma.hbm_to_vmem [thread:$0]  %s279, 2048, %s281, %s270, 64, 64, 4
        $region44: #{tpu_custom_call.1} parent=39 // pred_fallthru
          _
      $region40: #{tpu_custom_call.1} parent=5 // pred_fallthru
        _
      %p287 = scmp.le.s32.totalorder 1, %s21
      %p288 = scmp.lt.s32.totalorder %s21, 3
      %p289 = pnand %p287, %p288
      %p290 = pneg %p289
      // Predicated region
      $region45: #{tpu_custom_call.1} parent=5 // pred_check
        _
      $region46: #{tpu_custom_call.1} parent=5 // pred_check_branch
        %292 = sbr.rel (%p289) target = $region48
      $region47: #{tpu_custom_call.1} parent=5 // pred_region
        %s293 = ssub.s32 %s21, 1
        %s294 = sand.u32 %s34, 1
        %s295 = scalar_lea.sflag [#allocation3], %s294
        %s296 = sand.u32 %s34, 1
        %s297 = smul.addr %s296, 128
        %s298 = scalar_lea.vmem [#allocation2], %s297
        // Predicated region
        $region49: #{tpu_custom_call.1} parent=47 // pred_check
          %p299 = pneg %p47
        $region50: #{tpu_custom_call.1} parent=47 // pred_check_branch
          %301 = sbr.rel (%p299) target = $region52
        $region51: #{tpu_custom_call.1} parent=47 // pred_region
          %302 = dma.done %s295, 2048
        $region52: #{tpu_custom_call.1} parent=47 // pred_fallthru
          _
        // Predicated region
        $region53: #{tpu_custom_call.1} parent=47 // pred_check
          %p303 = pneg %p68
        $region54: #{tpu_custom_call.1} parent=47 // pred_check_branch
          %305 = sbr.rel (%p303) target = $region56
        $region55: #{tpu_custom_call.1} parent=47 // pred_region
          %306 = dma.done [#allocation6], 1024
        $region56: #{tpu_custom_call.1} parent=47 // pred_fallthru
          _
        // Predicated region
        $region57: #{tpu_custom_call.1} parent=47 // pred_check
          %p307 = pneg %p110
        $region58: #{tpu_custom_call.1} parent=47 // pred_check_branch
          %309 = sbr.rel (%p307) target = $region60
        $region59: #{tpu_custom_call.1} parent=47 // pred_region
          %310 = dma.done [#allocation6], 9216
        $region60: #{tpu_custom_call.1} parent=47 // pred_fallthru
          _
        // Predicated region
        $region61: #{tpu_custom_call.1} parent=47 // pred_check
          %p311 = pneg %p152
        $region62: #{tpu_custom_call.1} parent=47 // pred_check_branch
          %313 = sbr.rel (%p311) target = $region64
        $region63: #{tpu_custom_call.1} parent=47 // pred_region
          %314 = dma.done [#allocation9], 1024
        $region64: #{tpu_custom_call.1} parent=47 // pred_fallthru
          _
        %s315 = sand.u32 %s34, 1
        %s316 = scalar_lea.sflag [#allocation3], %s315
        %s317 = sand.u32 %s34, 1
        %s318 = smul.addr %s317, 128
        %s319 = scalar_lea.vmem [#allocation2], %s318
        %p320 = pneg %p47
        %p321 = pneg %p44
        %p322 = pneg %p68
        %p323 = pneg %p65
        %p324 = pneg %p89
        %p325 = pneg %p86
        %p326 = pneg %p110
        %p327 = pneg %p107
        %p328 = pneg %p131
        %p329 = pneg %p128
        %p330 = pneg %p152
        %p331 = pneg %p149
        %p332 = pneg %p173
        %p333 = pneg %p170
        %p334 = pneg %p199
        %p335 = pneg %p196
        %s336 = sand.u32 %s186, 1
        %s337 = scalar_lea.sflag [#allocation4], %s336
        %s338 = sand.u32 %s186, 1
        %s339 = smul.addr %s338, 128
        %s340 = scalar_lea.vmem [#allocation10], %s339
        %v342 = vld [vmem:[%s298] sm:$0xf]
        %v343 = vld [vmem:[%s298 + $0x4] sm:$0xf]
        %v344 = vld [vmem:[%s298 + $0x8] sm:$0xf]
        %v345 = vld [vmem:[%s298 + $0xc] sm:$0xf]
        %v346 = vld [vmem:[%s298 + $0x10] sm:$0xf]
        %v347 = vld [vmem:[%s298 + $0x14] sm:$0xf]
        %v348 = vld [vmem:[%s298 + $0x18] sm:$0xf]
        %v349 = vld [vmem:[%s298 + $0x1c] sm:$0xf]
        %v350 = vld [vmem:[%s298 + $0x20] sm:$0xf]
        %v351 = vld [vmem:[%s298 + $0x24] sm:$0xf]
        %v352 = vld [vmem:[%s298 + $0x28] sm:$0xf]
        %v353 = vld [vmem:[%s298 + $0x2c] sm:$0xf]
        %v354 = vld [vmem:[%s298 + $0x30] sm:$0xf]
        %v355 = vld [vmem:[%s298 + $0x34] sm:$0xf]
        %v356 = vld [vmem:[%s298 + $0x38] sm:$0xf]
        %v357 = vld [vmem:[%s298 + $0x3c] sm:$0xf]
        %v358 = vld [vmem:[%s298 + $0x40] sm:$0xf]
        %v359 = vld [vmem:[%s298 + $0x44] sm:$0xf]
        %v360 = vld [vmem:[%s298 + $0x48] sm:$0xf]
        %v361 = vld [vmem:[%s298 + $0x4c] sm:$0xf]
        %v362 = vld [vmem:[%s298 + $0x50] sm:$0xf]
        %v363 = vld [vmem:[%s298 + $0x54] sm:$0xf]
        %v364 = vld [vmem:[%s298 + $0x58] sm:$0xf]
        %v365 = vld [vmem:[%s298 + $0x5c] sm:$0xf]
        %v366 = vld [vmem:[%s298 + $0x60] sm:$0xf]
        %v367 = vld [vmem:[%s298 + $0x64] sm:$0xf]
        %v368 = vld [vmem:[%s298 + $0x68] sm:$0xf]
        %v369 = vld [vmem:[%s298 + $0x6c] sm:$0xf]
        %v370 = vld [vmem:[%s298 + $0x70] sm:$0xf]
        %v371 = vld [vmem:[%s298 + $0x74] sm:$0xf]
        %v372 = vld [vmem:[%s298 + $0x78] sm:$0xf]
        %v373 = vld [vmem:[%s298 + $0x7c] sm:$0xf]
        %v374 = vld [vmem:[#allocation5] sm:$0xf]
        %v375 = vld [vmem:[#allocation5 + $0x4] sm:$0xf]
        %v376 = vld [vmem:[#allocation5 + $0x8] sm:$0xf]
        %v377 = vld [vmem:[#allocation5 + $0xc] sm:$0xf]
        %v378 = vld [vmem:[#allocation5 + $0x10] sm:$0xf]
        %v379 = vld [vmem:[#allocation5 + $0x14] sm:$0xf]
        %v380 = vld [vmem:[#allocation5 + $0x18] sm:$0xf]
        %v381 = vld [vmem:[#allocation5 + $0x1c] sm:$0xf]
        %v382 = vld [vmem:[#allocation5 + $0x20] sm:$0xf]
        %v383 = vld [vmem:[#allocation5 + $0x24] sm:$0xf]
        %v384 = vld [vmem:[#allocation5 + $0x28] sm:$0xf]
        %v385 = vld [vmem:[#allocation5 + $0x2c] sm:$0xf]
        %v386 = vld [vmem:[#allocation5 + $0x30] sm:$0xf]
        %v387 = vld [vmem:[#allocation5 + $0x34] sm:$0xf]
        %v388 = vld [vmem:[#allocation5 + $0x38] sm:$0xf]
        %v389 = vld [vmem:[#allocation5 + $0x3c] sm:$0xf]
        %v390 = vld [vmem:[%s2] sm:$0x1]
        %v392 = vlaneseq
        %v393 = vshrl.u32 %v392, 7
        %v394 = vsub.s32 0, %v393
        %v395 = vrot.slane %v390, %v394
        %v429 = vunpack.c.l.b16 %v342
        %v430 = vunpack.c.l.b16 %v343
        %v431 = vunpack.c.l.b16 %v344
        %v432 = vunpack.c.l.b16 %v345
        %v433 = vunpack.c.l.b16 %v346
        %v434 = vunpack.c.l.b16 %v347
        %v435 = vunpack.c.l.b16 %v348
        %v436 = vunpack.c.l.b16 %v349
        %v437 = vunpack.c.l.b16 %v350
        %v438 = vunpack.c.l.b16 %v351
        %v439 = vunpack.c.l.b16 %v352
        %v440 = vunpack.c.l.b16 %v353
        %v441 = vunpack.c.l.b16 %v354
        %v442 = vunpack.c.l.b16 %v355
        %v443 = vunpack.c.l.b16 %v356
        %v444 = vunpack.c.l.b16 %v357
        %v445 = vunpack.c.l.b16 %v358
        %v446 = vunpack.c.l.b16 %v359
        %v447 = vunpack.c.l.b16 %v360
        %v448 = vunpack.c.l.b16 %v361
        %v449 = vunpack.c.l.b16 %v362
        %v450 = vunpack.c.l.b16 %v363
        %v451 = vunpack.c.l.b16 %v364
        %v452 = vunpack.c.l.b16 %v365
        %v453 = vunpack.c.l.b16 %v366
        %v454 = vunpack.c.l.b16 %v367
        %v455 = vunpack.c.l.b16 %v368
        %v456 = vunpack.c.l.b16 %v369
        %v457 = vunpack.c.l.b16 %v370
        %v458 = vunpack.c.l.b16 %v371
        %v459 = vunpack.c.l.b16 %v372
        %v460 = vunpack.c.l.b16 %v373
        %v461 = vpack.c.b16 %v430, %v429
        %v462 = vpack.c.b16 %v432, %v431
        %v463 = vpack.c.b16 %v434, %v433
        %v464 = vpack.c.b16 %v436, %v435
        %v465 = vpack.c.b16 %v438, %v437
        %v466 = vpack.c.b16 %v440, %v439
        %v467 = vpack.c.b16 %v442, %v441
        %v468 = vpack.c.b16 %v444, %v443
        %v469 = vpack.c.b16 %v446, %v445
        %v470 = vpack.c.b16 %v448, %v447
        %v471 = vpack.c.b16 %v450, %v449
        %v472 = vpack.c.b16 %v452, %v451
        %v473 = vpack.c.b16 %v454, %v453
        %v474 = vpack.c.b16 %v456, %v455
        %v475 = vpack.c.b16 %v458, %v457
        %v476 = vpack.c.b16 %v460, %v459
        %v509 = vunpack.c.l.b16 %v374
        %v510 = vunpack.c.l.b16 %v375
        %v511 = vunpack.c.l.b16 %v376
        %v512 = vunpack.c.l.b16 %v377
        %v513 = vunpack.c.l.b16 %v378
        %v514 = vunpack.c.l.b16 %v379
        %v515 = vunpack.c.l.b16 %v380
        %v516 = vunpack.c.l.b16 %v381
        %v517 = vunpack.c.l.b16 %v382
        %v518 = vunpack.c.l.b16 %v383
        %v519 = vunpack.c.l.b16 %v384
        %v520 = vunpack.c.l.b16 %v385
        %v521 = vunpack.c.l.b16 %v386
        %v522 = vunpack.c.l.b16 %v387
        %v523 = vunpack.c.l.b16 %v388
        %v524 = vunpack.c.l.b16 %v389
        %v525 = vpack.c.b16 %v510, %v509
        %v526 = vpack.c.b16 %v512, %v511
        %v527 = vpack.c.b16 %v514, %v513
        %v528 = vpack.c.b16 %v516, %v515
        %v529 = vpack.c.b16 %v518, %v517
        %v530 = vpack.c.b16 %v520, %v519
        %v531 = vpack.c.b16 %v522, %v521
        %v532 = vpack.c.b16 %v524, %v523
        %541 = vmatprep.subr.bf16.mxu0 0
        %542 = vmatpush1.bf16.msra.mxu0 %v525
        %543 = vmatprep.subr.bf16.mxu0 0
        %544 = vmatpush1.bf16.msra.mxu0 %v526
        %545 = vmatprep.subr.bf16.mxu0 0
        %546 = vmatpush1.bf16.msra.mxu0 %v527
        %547 = vmatprep.subr.bf16.mxu0 0
        %548 = vmatpush1.bf16.msra.mxu0 %v528
        %549 = vmatprep.subr.bf16.mxu0 0
        %550 = vmatpush1.bf16.msra.mxu0 %v529
        %551 = vmatprep.subr.bf16.mxu0 0
        %552 = vmatpush1.bf16.msra.mxu0 %v530
        %553 = vmatprep.subr.bf16.mxu0 0
        %554 = vmatpush1.bf16.msra.mxu0 %v531
        %555 = vmatprep.subr.bf16.mxu0 0
        %556 = vmatpush1.bf16.msra.mxu0 %v532
        %557 = vmatprep.subr.bf16.mxu0 0
        %558 = vmatpush1.bf16.msra.mxu0 0
        %559 = vmatprep.subr.bf16.mxu0 0
        %560 = vmatpush1.bf16.msra.mxu0 0
        %561 = vmatprep.subr.bf16.mxu0 0
        %562 = vmatpush1.bf16.msra.mxu0 0
        %563 = vmatprep.subr.bf16.mxu0 0
        %564 = vmatpush1.bf16.msra.mxu0 0
        %565 = vmatprep.subr.bf16.mxu0 0
        %566 = vmatpush1.bf16.msra.mxu0 0
        %567 = vmatprep.subr.bf16.mxu0 0
        %568 = vmatpush1.bf16.msra.mxu0 0
        %569 = vmatprep.subr.bf16.mxu0 0
        %570 = vmatpush1.bf16.msra.mxu0 0
        %571 = vmatprep.subr.bf16.mxu0 0
        %572 = vmatpush1.bf16.msra.mxu0 0
        %573 = vmatprep.mubr.bf16.mxu0 0
        %574 = vmatmul.mubr.bf16.gmra.mrb[0].mxu0 %v461
        %v575 = vpop.f32.mrb[0].mxu0
        %v576 = vadd.f32 %v395, %v575
        %v577 = vpop.f32.mrb[0].mxu0
        %v578 = vpop.f32.mrb[0].mxu0
        %v579 = vadd.f32 %v395, %v578
        %v580 = vpop.f32.mrb[0].mxu0
        %581 = vmatprep.mubr.bf16.mxu0 0
        %582 = vmatmul.mubr.bf16.gmra.mrb[0].mxu0 %v462
        %v583 = vpop.f32.mrb[0].mxu0
        %v584 = vadd.f32 %v395, %v583
        %v585 = vpop.f32.mrb[0].mxu0
        %v586 = vpop.f32.mrb[0].mxu0
        %v587 = vadd.f32 %v395, %v586
        %v588 = vpop.f32.mrb[0].mxu0
        %589 = vmatprep.mubr.bf16.mxu0 0
        %590 = vmatmul.mubr.bf16.gmra.mrb[0].mxu0 %v463
        %v591 = vpop.f32.mrb[0].mxu0
        %v592 = vadd.f32 %v395, %v591
        %v593 = vpop.f32.mrb[0].mxu0
        %v594 = vpop.f32.mrb[0].mxu0
        %v595 = vadd.f32 %v395, %v594
        %v596 = vpop.f32.mrb[0].mxu0
        %597 = vmatprep.mubr.bf16.mxu0 0
        %598 = vmatmul.mubr.bf16.gmra.mrb[0].mxu0 %v464
        %v599 = vpop.f32.mrb[0].mxu0
        %v600 = vadd.f32 %v395, %v599
        %v601 = vpop.f32.mrb[0].mxu0
        %v602 = vpop.f32.mrb[0].mxu0
        %v603 = vadd.f32 %v395, %v602
        %v604 = vpop.f32.mrb[0].mxu0
        %605 = vmatprep.mubr.bf16.mxu0 0
        %606 = vmatmul.mubr.bf16.gmra.mrb[0].mxu0 %v465
        %v607 = vpop.f32.mrb[0].mxu0
        %v608 = vadd.f32 %v395, %v607
        %v609 = vpop.f32.mrb[0].mxu0
        %v610 = vpop.f32.mrb[0].mxu0
        %v611 = vadd.f32 %v395, %v610
        %v612 = vpop.f32.mrb[0].mxu0
        %613 = vmatprep.mubr.bf16.mxu0 0
        %614 = vmatmul.mubr.bf16.gmra.mrb[0].mxu0 %v466
        %v615 = vpop.f32.mrb[0].mxu0
        %v616 = vadd.f32 %v395, %v615
        %v617 = vpop.f32.mrb[0].mxu0
        %v618 = vpop.f32.mrb[0].mxu0
        %v619 = vadd.f32 %v395, %v618
        %v620 = vpop.f32.mrb[0].mxu0
        %621 = vmatprep.mubr.bf16.mxu0 0
        %622 = vmatmul.mubr.bf16.gmra.mrb[0].mxu0 %v467
        %v623 = vpop.f32.mrb[0].mxu0
        %v624 = vadd.f32 %v395, %v623
        %v625 = vpop.f32.mrb[0].mxu0
        %v626 = vpop.f32.mrb[0].mxu0
        %v627 = vadd.f32 %v395, %v626
        %v628 = vpop.f32.mrb[0].mxu0
        %629 = vmatprep.mubr.bf16.mxu0 0
        %630 = vmatmul.mubr.bf16.gmra.mrb[0].mxu0 %v468
        %v631 = vpop.f32.mrb[0].mxu0
        %v632 = vadd.f32 %v395, %v631
        %v633 = vpop.f32.mrb[0].mxu0
        %v634 = vpop.f32.mrb[0].mxu0
        %v635 = vadd.f32 %v395, %v634
        %v636 = vpop.f32.mrb[0].mxu0
        %637 = vmatprep.mubr.bf16.mxu0 0
        %638 = vmatmul.mubr.bf16.gmra.mrb[0].mxu0 %v469
        %v639 = vpop.f32.mrb[0].mxu0
        %v640 = vadd.f32 %v395, %v639
        %v641 = vpop.f32.mrb[0].mxu0
        %v642 = vpop.f32.mrb[0].mxu0
        %v643 = vadd.f32 %v395, %v642
        %v644 = vpop.f32.mrb[0].mxu0
        %645 = vmatprep.mubr.bf16.mxu0 0
        %646 = vmatmul.mubr.bf16.gmra.mrb[0].mxu0 %v470
        %v647 = vpop.f32.mrb[0].mxu0
        %v648 = vadd.f32 %v395, %v647
        %v649 = vpop.f32.mrb[0].mxu0
        %v650 = vpop.f32.mrb[0].mxu0
        %v651 = vadd.f32 %v395, %v650
        %v652 = vpop.f32.mrb[0].mxu0
        %653 = vmatprep.mubr.bf16.mxu0 0
        %654 = vmatmul.mubr.bf16.gmra.mrb[0].mxu0 %v471
        %v655 = vpop.f32.mrb[0].mxu0
        %v656 = vadd.f32 %v395, %v655
        %v657 = vpop.f32.mrb[0].mxu0
        %v658 = vpop.f32.mrb[0].mxu0
        %v659 = vadd.f32 %v395, %v658
        %v660 = vpop.f32.mrb[0].mxu0
        %661 = vmatprep.mubr.bf16.mxu0 0
        %662 = vmatmul.mubr.bf16.gmra.mrb[0].mxu0 %v472
        %v663 = vpop.f32.mrb[0].mxu0
        %v664 = vadd.f32 %v395, %v663
        %v665 = vpop.f32.mrb[0].mxu0
        %v666 = vpop.f32.mrb[0].mxu0
        %v667 = vadd.f32 %v395, %v666
        %v668 = vpop.f32.mrb[0].mxu0
        %669 = vmatprep.mubr.bf16.mxu0 0
        %670 = vmatmul.mubr.bf16.gmra.mrb[0].mxu0 %v473
        %v671 = vpop.f32.mrb[0].mxu0
        %v672 = vadd.f32 %v395, %v671
        %v673 = vpop.f32.mrb[0].mxu0
        %v674 = vpop.f32.mrb[0].mxu0
        %v675 = vadd.f32 %v395, %v674
        %v676 = vpop.f32.mrb[0].mxu0
        %677 = vmatprep.mubr.bf16.mxu0 0
        %678 = vmatmul.mubr.bf16.gmra.mrb[0].mxu0 %v474
        %v679 = vpop.f32.mrb[0].mxu0
        %v680 = vadd.f32 %v395, %v679
        %v681 = vpop.f32.mrb[0].mxu0
        %v682 = vpop.f32.mrb[0].mxu0
        %v683 = vadd.f32 %v395, %v682
        %v684 = vpop.f32.mrb[0].mxu0
        %685 = vmatprep.mubr.bf16.mxu0 0
        %686 = vmatmul.mubr.bf16.gmra.mrb[0].mxu0 %v475
        %v687 = vpop.f32.mrb[0].mxu0
        %v688 = vadd.f32 %v395, %v687
        %v689 = vpop.f32.mrb[0].mxu0
        %v690 = vpop.f32.mrb[0].mxu0
        %v691 = vadd.f32 %v395, %v690
        %v692 = vpop.f32.mrb[0].mxu0
        %693 = vmatprep.mubr.bf16.mxu0 0
        %694 = vmatmul.mubr.bf16.gmra.mrb[0].mxu0 %v476
        %v695 = vpop.f32.mrb[0].mxu0
        %v696 = vadd.f32 %v395, %v695
        %v697 = vpop.f32.mrb[0].mxu0
        %v698 = vpop.f32.mrb[0].mxu0
        %v699 = vadd.f32 %v395, %v698
        %v700 = vpop.f32.mrb[0].mxu0
        %701 = vdwg.mxu0
        %v702 = vmax.f32 %v576, 0.0
        %v703 = vmax.f32 %v579, 0.0
        %v704 = vmax.f32 %v584, 0.0
        %v705 = vmax.f32 %v587, 0.0
        %v706 = vmax.f32 %v592, 0.0
        %v707 = vmax.f32 %v595, 0.0
        %v708 = vmax.f32 %v600, 0.0
        %v709 = vmax.f32 %v603, 0.0
        %v710 = vmax.f32 %v608, 0.0
        %v711 = vmax.f32 %v611, 0.0
        %v712 = vmax.f32 %v616, 0.0
        %v713 = vmax.f32 %v619, 0.0
        %v714 = vmax.f32 %v624, 0.0
        %v715 = vmax.f32 %v627, 0.0
        %v716 = vmax.f32 %v632, 0.0
        %v717 = vmax.f32 %v635, 0.0
        %v718 = vmax.f32 %v640, 0.0
        %v719 = vmax.f32 %v643, 0.0
        %v720 = vmax.f32 %v648, 0.0
        %v721 = vmax.f32 %v651, 0.0
        %v722 = vmax.f32 %v656, 0.0
        %v723 = vmax.f32 %v659, 0.0
        %v724 = vmax.f32 %v664, 0.0
        %v725 = vmax.f32 %v667, 0.0
        %v726 = vmax.f32 %v672, 0.0
        %v727 = vmax.f32 %v675, 0.0
        %v728 = vmax.f32 %v680, 0.0
        %v729 = vmax.f32 %v683, 0.0
        %v730 = vmax.f32 %v688, 0.0
        %v731 = vmax.f32 %v691, 0.0
        %v732 = vmax.f32 %v696, 0.0
        %v733 = vmax.f32 %v699, 0.0
        %v734 = vpack.c.bf16 %v703, %v702
        %v735 = vpack.c.bf16 %v705, %v704
        %v736 = vpack.c.bf16 %v707, %v706
        %v737 = vpack.c.bf16 %v709, %v708
        %v738 = vpack.c.bf16 %v711, %v710
        %v739 = vpack.c.bf16 %v713, %v712
        %v740 = vpack.c.bf16 %v715, %v714
        %v741 = vpack.c.bf16 %v717, %v716
        %v742 = vpack.c.bf16 %v719, %v718
        %v743 = vpack.c.bf16 %v721, %v720
        %v744 = vpack.c.bf16 %v723, %v722
        %v745 = vpack.c.bf16 %v725, %v724
        %v746 = vpack.c.bf16 %v727, %v726
        %v747 = vpack.c.bf16 %v729, %v728
        %v748 = vpack.c.bf16 %v731, %v730
        %v749 = vpack.c.bf16 %v733, %v732
        %v751 = vshrl.u32 0, 16
        %v753 = vrot.slane %v751, 7
        %v754 = vshll.u32 0, 16
        %v756 = vor.u32 %v753, %v754
        %v758 = vshrl.u32 %v734, 16
        %v760 = vrot.slane %v758, 7
        %v761 = vshll.u32 %v734, 16
        %v763 = vor.u32 %v760, %v761
        %v765 = vshrl.u32 %v735, 16
        %v767 = vrot.slane %v765, 7
        %v768 = vshll.u32 %v735, 16
        %v770 = vor.u32 %v767, %v768
        %v772 = vshrl.u32 %v736, 16
        %v774 = vrot.slane %v772, 7
        %v775 = vshll.u32 %v736, 16
        %v777 = vor.u32 %v774, %v775
        %v779 = vshrl.u32 %v737, 16
        %v781 = vrot.slane %v779, 7
        %v782 = vshll.u32 %v737, 16
        %v784 = vor.u32 %v781, %v782
        %v786 = vshrl.u32 %v738, 16
        %v788 = vrot.slane %v786, 7
        %v789 = vshll.u32 %v738, 16
        %v791 = vor.u32 %v788, %v789
        %v793 = vshrl.u32 %v739, 16
        %v795 = vrot.slane %v793, 7
        %v796 = vshll.u32 %v739, 16
        %v798 = vor.u32 %v795, %v796
        %v800 = vshrl.u32 %v740, 16
        %v802 = vrot.slane %v800, 7
        %v803 = vshll.u32 %v740, 16
        %v805 = vor.u32 %v802, %v803
        %v807 = vshrl.u32 %v741, 16
        %v809 = vrot.slane %v807, 7
        %v810 = vshll.u32 %v741, 16
        %v812 = vor.u32 %v809, %v810
        %v814 = vshrl.u32 %v742, 16
        %v816 = vrot.slane %v814, 7
        %v817 = vshll.u32 %v742, 16
        %v819 = vor.u32 %v816, %v817
        %v821 = vshrl.u32 %v743, 16
        %v823 = vrot.slane %v821, 7
        %v824 = vshll.u32 %v743, 16
        %v826 = vor.u32 %v823, %v824
        %v828 = vshrl.u32 %v744, 16
        %v830 = vrot.slane %v828, 7
        %v831 = vshll.u32 %v744, 16
        %v833 = vor.u32 %v830, %v831
        %v835 = vshrl.u32 %v745, 16
        %v837 = vrot.slane %v835, 7
        %v838 = vshll.u32 %v745, 16
        %v840 = vor.u32 %v837, %v838
        %v842 = vshrl.u32 %v746, 16
        %v844 = vrot.slane %v842, 7
        %v845 = vshll.u32 %v746, 16
        %v847 = vor.u32 %v844, %v845
        %v849 = vshrl.u32 %v747, 16
        %v851 = vrot.slane %v849, 7
        %v852 = vshll.u32 %v747, 16
        %v854 = vor.u32 %v851, %v852
        %v856 = vshrl.u32 %v748, 16
        %v858 = vrot.slane %v856, 7
        %v859 = vshll.u32 %v748, 16
        %v861 = vor.u32 %v858, %v859
        %v863 = vshrl.u32 %v749, 16
        %v865 = vrot.slane %v863, 7
        %v866 = vshll.u32 %v749, 16
        %v868 = vor.u32 %v865, %v866
        %vm886 = vcmask 1040384
        %vm887 = vsmask.f32 256
        %vm888 = vmand %vm886, %vm887
        %v889 = vsel %vm888, 0, %v756
        %v890 = vsel %vm888, 0, %v763
        %v891 = vsel %vm888, 0, %v770
        %v892 = vsel %vm888, 0, %v777
        %v893 = vsel %vm888, 0, %v784
        %v894 = vsel %vm888, 0, %v791
        %v895 = vsel %vm888, 0, %v798
        %v896 = vsel %vm888, 0, %v805
        %v897 = vsel %vm888, 0, %v812
        %v898 = vsel %vm888, 0, %v819
        %v899 = vsel %vm888, 0, %v826
        %v900 = vsel %vm888, 0, %v833
        %v901 = vsel %vm888, 0, %v840
        %v902 = vsel %vm888, 0, %v847
        %v903 = vsel %vm888, 0, %v854
        %v904 = vsel %vm888, 0, %v861
        %v905 = vsel %vm888, 0, %v868
        %v906 = vrot.slane %v754, 1
        %v907 = vor.u32 %v751, %v906
        %v908 = vrot.slane %v761, 1
        %v909 = vor.u32 %v758, %v908
        %v910 = vrot.slane %v768, 1
        %v911 = vor.u32 %v765, %v910
        %v912 = vrot.slane %v775, 1
        %v913 = vor.u32 %v772, %v912
        %v914 = vrot.slane %v782, 1
        %v915 = vor.u32 %v779, %v914
        %v916 = vrot.slane %v789, 1
        %v917 = vor.u32 %v786, %v916
        %v918 = vrot.slane %v796, 1
        %v919 = vor.u32 %v793, %v918
        %v920 = vrot.slane %v803, 1
        %v921 = vor.u32 %v800, %v920
        %v922 = vrot.slane %v810, 1
        %v923 = vor.u32 %v807, %v922
        %v924 = vrot.slane %v817, 1
        %v925 = vor.u32 %v814, %v924
        %v926 = vrot.slane %v824, 1
        %v927 = vor.u32 %v821, %v926
        %v928 = vrot.slane %v831, 1
        %v929 = vor.u32 %v828, %v928
        %v930 = vrot.slane %v838, 1
        %v931 = vor.u32 %v835, %v930
        %v932 = vrot.slane %v845, 1
        %v933 = vor.u32 %v842, %v932
        %v934 = vrot.slane %v852, 1
        %v935 = vor.u32 %v849, %v934
        %v936 = vrot.slane %v859, 1
        %v937 = vor.u32 %v856, %v936
        %v938 = vrot.slane %v866, 1
        %v939 = vor.u32 %v863, %v938
        %vm957 = vcmask 1047552
        %vm958 = vsmask.f32 7424
        %vm959 = vmand %vm957, %vm958
        %v960 = vsel %vm959, %v907, 0
        %v961 = vsel %vm959, %v909, 0
        %v962 = vsel %vm959, %v911, 0
        %v963 = vsel %vm959, %v913, 0
        %v964 = vsel %vm959, %v915, 0
        %v965 = vsel %vm959, %v917, 0
        %v966 = vsel %vm959, %v919, 0
        %v967 = vsel %vm959, %v921, 0
        %v968 = vsel %vm959, %v923, 0
        %v969 = vsel %vm959, %v925, 0
        %v970 = vsel %vm959, %v927, 0
        %v971 = vsel %vm959, %v929, 0
        %v972 = vsel %vm959, %v931, 0
        %v973 = vsel %vm959, %v933, 0
        %v974 = vsel %vm959, %v935, 0
        %v975 = vsel %vm959, %v937, 0
        %v976 = vsel %vm959, %v939, 0
        %v977 = vld [vmem:[#allocation7] sm:$0xf]
        %v978 = vld [vmem:[#allocation7 + $0x4] sm:$0xf]
        %v979 = vld [vmem:[#allocation7 + $0x8] sm:$0xf]
        %v980 = vld [vmem:[#allocation7 + $0xc] sm:$0xf]
        %v981 = vld [vmem:[#allocation7 + $0x10] sm:$0xf]
        %v982 = vld [vmem:[#allocation7 + $0x14] sm:$0xf]
        %v983 = vld [vmem:[#allocation7 + $0x18] sm:$0xf]
        %v984 = vld [vmem:[#allocation7 + $0x1c] sm:$0xf]
        %v985 = vld [vmem:[#allocation7 + $0x20] sm:$0xf]
        %v986 = vld [vmem:[#allocation7 + $0x24] sm:$0xf]
        %v987 = vld [vmem:[#allocation7 + $0x28] sm:$0xf]
        %v988 = vld [vmem:[#allocation7 + $0x2c] sm:$0xf]
        %v989 = vld [vmem:[#allocation7 + $0x30] sm:$0xf]
        %v990 = vld [vmem:[#allocation7 + $0x34] sm:$0xf]
        %v991 = vld [vmem:[#allocation7 + $0x38] sm:$0xf]
        %v992 = vld [vmem:[#allocation7 + $0x3c] sm:$0xf]
        %v993 = vld [vmem:[#allocation7 + $0x40] sm:$0xf]
        %v994 = vld [vmem:[#allocation7 + $0x44] sm:$0xf]
        %v995 = vld [vmem:[#allocation7 + $0x48] sm:$0xf]
        %v996 = vld [vmem:[#allocation7 + $0x4c] sm:$0xf]
        %v997 = vld [vmem:[#allocation7 + $0x50] sm:$0xf]
        %v998 = vld [vmem:[#allocation7 + $0x54] sm:$0xf]
        %v999 = vld [vmem:[#allocation7 + $0x58] sm:$0xf]
        %v1000 = vld [vmem:[#allocation7 + $0x5c] sm:$0xf]
        %v1001 = vld [vmem:[#allocation7 + $0x60] sm:$0xf]
        %v1002 = vld [vmem:[#allocation7 + $0x64] sm:$0xf]
        %v1003 = vld [vmem:[#allocation7 + $0x68] sm:$0xf]
        %v1004 = vld [vmem:[#allocation7 + $0x6c] sm:$0xf]
        %v1005 = vld [vmem:[#allocation7 + $0x70] sm:$0xf]
        %v1006 = vld [vmem:[#allocation7 + $0x74] sm:$0xf]
        %v1007 = vld [vmem:[#allocation7 + $0x78] sm:$0xf]
        %v1008 = vld [vmem:[#allocation7 + $0x7c] sm:$0xf]
        %v1009 = vld [vmem:[#allocation7 + $0x80] sm:$0xf]
        %v1010 = vld [vmem:[#allocation7 + $0x84] sm:$0xf]
        %v1011 = vld [vmem:[#allocation7 + $0x88] sm:$0xf]
        %v1012 = vld [vmem:[#allocation7 + $0x8c] sm:$0xf]
        %v1013 = vld [vmem:[#allocation7 + $0x90] sm:$0xf]
        %v1014 = vld [vmem:[#allocation7 + $0x94] sm:$0xf]
        %v1015 = vld [vmem:[#allocation7 + $0x98] sm:$0xf]
        %v1016 = vld [vmem:[#allocation7 + $0x9c] sm:$0xf]
        %v1017 = vld [vmem:[#allocation7 + $0xa0] sm:$0xf]
        %v1018 = vld [vmem:[#allocation7 + $0xa4] sm:$0xf]
        %v1019 = vld [vmem:[#allocation7 + $0xa8] sm:$0xf]
        %v1020 = vld [vmem:[#allocation7 + $0xac] sm:$0xf]
        %v1021 = vld [vmem:[#allocation7 + $0xb0] sm:$0xf]
        %v1022 = vld [vmem:[#allocation7 + $0xb4] sm:$0xf]
        %v1023 = vld [vmem:[#allocation7 + $0xb8] sm:$0xf]
        %v1024 = vld [vmem:[#allocation7 + $0xbc] sm:$0xf]
        %s1025 = scalar_lea.vmem [#allocation7], 192
        %v1026 = vld [vmem:[%s1025] sm:$0xf]
        %v1027 = vld [vmem:[%s1025 + $0x4] sm:$0xf]
        %v1028 = vld [vmem:[%s1025 + $0x8] sm:$0xf]
        %v1029 = vld [vmem:[%s1025 + $0xc] sm:$0xf]
        %v1030 = vld [vmem:[%s1025 + $0x10] sm:$0xf]
        %v1031 = vld [vmem:[%s1025 + $0x14] sm:$0xf]
        %v1032 = vld [vmem:[%s1025 + $0x18] sm:$0xf]
        %v1033 = vld [vmem:[%s1025 + $0x1c] sm:$0xf]
        %v1034 = vld [vmem:[%s1025 + $0x20] sm:$0xf]
        %v1035 = vld [vmem:[%s1025 + $0x24] sm:$0xf]
        %v1036 = vld [vmem:[%s1025 + $0x28] sm:$0xf]
        %v1037 = vld [vmem:[%s1025 + $0x2c] sm:$0xf]
        %v1038 = vld [vmem:[%s1025 + $0x30] sm:$0xf]
        %v1039 = vld [vmem:[%s1025 + $0x34] sm:$0xf]
        %v1040 = vld [vmem:[%s1025 + $0x38] sm:$0xf]
        %v1041 = vld [vmem:[%s1025 + $0x3c] sm:$0xf]
        %v1042 = vld [vmem:[%s1025 + $0x40] sm:$0xf]
        %v1043 = vld [vmem:[%s1025 + $0x44] sm:$0xf]
        %v1044 = vld [vmem:[%s1025 + $0x48] sm:$0xf]
        %v1045 = vld [vmem:[%s1025 + $0x4c] sm:$0xf]
        %v1046 = vld [vmem:[%s1025 + $0x50] sm:$0xf]
        %v1047 = vld [vmem:[%s1025 + $0x54] sm:$0xf]
        %v1048 = vld [vmem:[%s1025 + $0x58] sm:$0xf]
        %v1049 = vld [vmem:[%s1025 + $0x5c] sm:$0xf]
        %v1050 = vld [vmem:[%s1025 + $0x60] sm:$0xf]
        %v1051 = vld [vmem:[%s1025 + $0x64] sm:$0xf]
        %v1052 = vld [vmem:[%s1025 + $0x68] sm:$0xf]
        %v1053 = vld [vmem:[%s1025 + $0x6c] sm:$0xf]
        %v1054 = vld [vmem:[%s1025 + $0x70] sm:$0xf]
        %v1055 = vld [vmem:[%s1025 + $0x74] sm:$0xf]
        %v1056 = vld [vmem:[%s1025 + $0x78] sm:$0xf]
        %v1057 = vld [vmem:[%s1025 + $0x7c] sm:$0xf]
        %v1058 = vld [vmem:[%s1025 + $0x80] sm:$0xf]
        %v1059 = vld [vmem:[%s1025 + $0x84] sm:$0xf]
        %v1060 = vld [vmem:[%s1025 + $0x88] sm:$0xf]
        %v1061 = vld [vmem:[%s1025 + $0x8c] sm:$0xf]
        %v1062 = vld [vmem:[%s1025 + $0x90] sm:$0xf]
        %v1063 = vld [vmem:[%s1025 + $0x94] sm:$0xf]
        %v1064 = vld [vmem:[%s1025 + $0x98] sm:$0xf]
        %v1065 = vld [vmem:[%s1025 + $0x9c] sm:$0xf]
        %v1066 = vld [vmem:[%s1025 + $0xa0] sm:$0xf]
        %v1067 = vld [vmem:[%s1025 + $0xa4] sm:$0xf]
        %v1068 = vld [vmem:[%s1025 + $0xa8] sm:$0xf]
        %v1069 = vld [vmem:[%s1025 + $0xac] sm:$0xf]
        %v1070 = vld [vmem:[%s1025 + $0xb0] sm:$0xf]
        %v1071 = vld [vmem:[%s1025 + $0xb4] sm:$0xf]
        %v1072 = vld [vmem:[%s1025 + $0xb8] sm:$0xf]
        %v1073 = vld [vmem:[%s1025 + $0xbc] sm:$0xf]
        %v1122 = vunpack.c.l.b16 %v1026
        %v1123 = vunpack.c.l.b16 %v1027
        %v1124 = vunpack.c.l.b16 %v1028
        %v1125 = vunpack.c.l.b16 %v1029
        %v1126 = vunpack.c.l.b16 %v1030
        %v1127 = vunpack.c.l.b16 %v1031
        %v1128 = vunpack.c.l.b16 %v1032
        %v1129 = vunpack.c.l.b16 %v1033
        %v1130 = vunpack.c.l.b16 %v1034
        %v1131 = vunpack.c.l.b16 %v1035
        %v1132 = vunpack.c.l.b16 %v1036
        %v1133 = vunpack.c.l.b16 %v1037
        %v1134 = vunpack.c.l.b16 %v1038
        %v1135 = vunpack.c.l.b16 %v1039
        %v1136 = vunpack.c.l.b16 %v1040
        %v1137 = vunpack.c.l.b16 %v1041
        %v1138 = vunpack.c.l.b16 %v1042
        %v1139 = vunpack.c.l.b16 %v1043
        %v1140 = vunpack.c.l.b16 %v1044
        %v1141 = vunpack.c.l.b16 %v1045
        %v1142 = vunpack.c.l.b16 %v1046
        %v1143 = vunpack.c.l.b16 %v1047
        %v1144 = vunpack.c.l.b16 %v1048
        %v1145 = vunpack.c.l.b16 %v1049
        %v1146 = vunpack.c.l.b16 %v1050
        %v1147 = vunpack.c.l.b16 %v1051
        %v1148 = vunpack.c.l.b16 %v1052
        %v1149 = vunpack.c.l.b16 %v1053
        %v1150 = vunpack.c.l.b16 %v1054
        %v1151 = vunpack.c.l.b16 %v1055
        %v1152 = vunpack.c.l.b16 %v1056
        %v1153 = vunpack.c.l.b16 %v1057
        %v1154 = vunpack.c.l.b16 %v1058
        %v1155 = vunpack.c.l.b16 %v1059
        %v1156 = vunpack.c.l.b16 %v1060
        %v1157 = vunpack.c.l.b16 %v1061
        %v1158 = vunpack.c.l.b16 %v1062
        %v1159 = vunpack.c.l.b16 %v1063
        %v1160 = vunpack.c.l.b16 %v1064
        %v1161 = vunpack.c.l.b16 %v1065
        %v1162 = vunpack.c.l.b16 %v1066
        %v1163 = vunpack.c.l.b16 %v1067
        %v1164 = vunpack.c.l.b16 %v1068
        %v1165 = vunpack.c.l.b16 %v1069
        %v1166 = vunpack.c.l.b16 %v1070
        %v1167 = vunpack.c.l.b16 %v1071
        %v1168 = vunpack.c.l.b16 %v1072
        %v1169 = vunpack.c.l.b16 %v1073
        %v1170 = vpack.c.b16 %v1123, %v1122
        %v1171 = vpack.c.b16 %v1125, %v1124
        %v1172 = vpack.c.b16 %v1127, %v1126
        %v1173 = vpack.c.b16 %v1129, %v1128
        %v1174 = vpack.c.b16 %v1131, %v1130
        %v1175 = vpack.c.b16 %v1133, %v1132
        %v1176 = vpack.c.b16 %v1135, %v1134
        %v1177 = vpack.c.b16 %v1137, %v1136
        %v1178 = vpack.c.b16 %v1139, %v1138
        %v1179 = vpack.c.b16 %v1141, %v1140
        %v1180 = vpack.c.b16 %v1143, %v1142
        %v1181 = vpack.c.b16 %v1145, %v1144
        %v1182 = vpack.c.b16 %v1147, %v1146
        %v1183 = vpack.c.b16 %v1149, %v1148
        %v1184 = vpack.c.b16 %v1151, %v1150
        %v1185 = vpack.c.b16 %v1153, %v1152
        %v1186 = vpack.c.b16 %v1155, %v1154
        %v1187 = vpack.c.b16 %v1157, %v1156
        %v1188 = vpack.c.b16 %v1159, %v1158
        %v1189 = vpack.c.b16 %v1161, %v1160
        %v1190 = vpack.c.b16 %v1163, %v1162
        %v1191 = vpack.c.b16 %v1165, %v1164
        %v1192 = vpack.c.b16 %v1167, %v1166
        %v1193 = vpack.c.b16 %v1169, %v1168
        %1218 = vmatprep.subr.bf16.mxu0 0
        %1219 = vmatpush1.bf16.msra.mxu0 %v1170
        %1220 = vmatprep.subr.bf16.mxu0 0
        %1221 = vmatpush1.bf16.msra.mxu0 %v1171
        %1222 = vmatprep.subr.bf16.mxu0 0
        %1223 = vmatpush1.bf16.msra.mxu0 %v1172
        %1224 = vmatprep.subr.bf16.mxu0 0
        %1225 = vmatpush1.bf16.msra.mxu0 %v1173
        %1226 = vmatprep.subr.bf16.mxu0 0
        %1227 = vmatpush1.bf16.msra.mxu0 %v1174
        %1228 = vmatprep.subr.bf16.mxu0 0
        %1229 = vmatpush1.bf16.msra.mxu0 %v1175
        %1230 = vmatprep.subr.bf16.mxu0 0
        %1231 = vmatpush1.bf16.msra.mxu0 %v1176
        %1232 = vmatprep.subr.bf16.mxu0 0
        %1233 = vmatpush1.bf16.msra.mxu0 %v1177
        %1234 = vmatprep.subr.bf16.mxu0 0
        %1235 = vmatpush1.bf16.msra.mxu0 %v1178
        %1236 = vmatprep.subr.bf16.mxu0 0
        %1237 = vmatpush1.bf16.msra.mxu0 %v1179
        %1238 = vmatprep.subr.bf16.mxu0 0
        %1239 = vmatpush1.bf16.msra.mxu0 %v1180
        %1240 = vmatprep.subr.bf16.mxu0 0
        %1241 = vmatpush1.bf16.msra.mxu0 %v1181
        %1242 = vmatprep.subr.bf16.mxu0 0
        %1243 = vmatpush1.bf16.msra.mxu0 %v1182
        %1244 = vmatprep.subr.bf16.mxu0 0
        %1245 = vmatpush1.bf16.msra.mxu0 %v1183
        %1246 = vmatprep.subr.bf16.mxu0 0
        %1247 = vmatpush1.bf16.msra.mxu0 %v1184
        %1248 = vmatprep.subr.bf16.mxu0 0
        %1249 = vmatpush1.bf16.msra.mxu0 %v1185
        %1250 = vmatprep.mubr.bf16.mxu0 %v734
        %1251 = vmatmul.mubr.bf16.gmra.mrb[0].mxu0 %v890
        %v1252 = vpop.f32.mrb[0].mxu0
        %v1253 = vadd.f32 0.0, %v1252
        %v1254 = vpop.f32.mrb[0].mxu0
        %v1255 = vpop.f32.mrb[0].mxu0
        %v1256 = vadd.f32 0.0, %v1255
        %v1257 = vpop.f32.mrb[0].mxu0
        %1258 = vmatprep.mubr.bf16.mxu0 %v735
        %1259 = vmatmul.mubr.bf16.gmra.mrb[0].mxu0 %v891
        %v1260 = vpop.f32.mrb[0].mxu0
        %v1261 = vadd.f32 0.0, %v1260
        %v1262 = vpop.f32.mrb[0].mxu0
        %v1263 = vpop.f32.mrb[0].mxu0
        %v1264 = vadd.f32 0.0, %v1263
        %v1265 = vpop.f32.mrb[0].mxu0
        %1266 = vmatprep.mubr.bf16.mxu0 %v736
        %1267 = vmatmul.mubr.bf16.gmra.mrb[0].mxu0 %v892
        %v1268 = vpop.f32.mrb[0].mxu0
        %v1269 = vadd.f32 0.0, %v1268
        %v1270 = vpop.f32.mrb[0].mxu0
        %v1271 = vpop.f32.mrb[0].mxu0
        %v1272 = vadd.f32 0.0, %v1271
        %v1273 = vpop.f32.mrb[0].mxu0
        %1274 = vmatprep.mubr.bf16.mxu0 %v737
        %1275 = vmatmul.mubr.bf16.gmra.mrb[0].mxu0 %v893
        %v1276 = vpop.f32.mrb[0].mxu0
        %v1277 = vadd.f32 0.0, %v1276
        %v1278 = vpop.f32.mrb[0].mxu0
        %v1279 = vpop.f32.mrb[0].mxu0
        %v1280 = vadd.f32 0.0, %v1279
        %v1281 = vpop.f32.mrb[0].mxu0
        %1282 = vmatprep.mubr.bf16.mxu0 %v738
        %1283 = vmatmul.mubr.bf16.gmra.mrb[0].mxu0 %v894
        %v1284 = vpop.f32.mrb[0].mxu0
        %v1285 = vadd.f32 0.0, %v1284
        %v1286 = vpop.f32.mrb[0].mxu0
        %v1287 = vpop.f32.mrb[0].mxu0
        %v1288 = vadd.f32 0.0, %v1287
        %v1289 = vpop.f32.mrb[0].mxu0
        %1290 = vmatprep.mubr.bf16.mxu0 %v739
        %1291 = vmatmul.mubr.bf16.gmra.mrb[0].mxu0 %v895
        %v1292 = vpop.f32.mrb[0].mxu0
        %v1293 = vadd.f32 0.0, %v1292
        %v1294 = vpop.f32.mrb[0].mxu0
        %v1295 = vpop.f32.mrb[0].mxu0
        %v1296 = vadd.f32 0.0, %v1295
        %v1297 = vpop.f32.mrb[0].mxu0
        %1298 = vmatprep.mubr.bf16.mxu0 %v740
        %1299 = vmatmul.mubr.bf16.gmra.mrb[0].mxu0 %v896
        %v1300 = vpop.f32.mrb[0].mxu0
        %v1301 = vadd.f32 0.0, %v1300
        %v1302 = vpop.f32.mrb[0].mxu0
        %v1303 = vpop.f32.mrb[0].mxu0
        %v1304 = vadd.f32 0.0, %v1303
        %v1305 = vpop.f32.mrb[0].mxu0
        %1306 = vmatprep.mubr.bf16.mxu0 %v741
        %1307 = vmatmul.mubr.bf16.gmra.mrb[0].mxu0 %v897
        %v1308 = vpop.f32.mrb[0].mxu0
        %v1309 = vadd.f32 0.0, %v1308
        %v1310 = vpop.f32.mrb[0].mxu0
        %v1311 = vpop.f32.mrb[0].mxu0
        %v1312 = vadd.f32 0.0, %v1311
        %v1313 = vpop.f32.mrb[0].mxu0
        %1314 = vmatprep.mubr.bf16.mxu0 %v742
        %1315 = vmatmul.mubr.bf16.gmra.mrb[0].mxu0 %v898
        %v1316 = vpop.f32.mrb[0].mxu0
        %v1317 = vadd.f32 0.0, %v1316
        %v1318 = vpop.f32.mrb[0].mxu0
        %v1319 = vpop.f32.mrb[0].mxu0
        %v1320 = vadd.f32 0.0, %v1319
        %v1321 = vpop.f32.mrb[0].mxu0
        %1322 = vmatprep.mubr.bf16.mxu0 %v743
        %1323 = vmatmul.mubr.bf16.gmra.mrb[0].mxu0 %v899
        %v1324 = vpop.f32.mrb[0].mxu0
        %v1325 = vadd.f32 0.0, %v1324
        %v1326 = vpop.f32.mrb[0].mxu0
        %v1327 = vpop.f32.mrb[0].mxu0
        %v1328 = vadd.f32 0.0, %v1327
        %v1329 = vpop.f32.mrb[0].mxu0
        %1330 = vmatprep.mubr.bf16.mxu0 %v744
        %1331 = vmatmul.mubr.bf16.gmra.mrb[0].mxu0 %v900
        %v1332 = vpop.f32.mrb[0].mxu0
        %v1333 = vadd.f32 0.0, %v1332
        %v1334 = vpop.f32.mrb[0].mxu0
        %v1335 = vpop.f32.mrb[0].mxu0
        %v1336 = vadd.f32 0.0, %v1335
        %v1337 = vpop.f32.mrb[0].mxu0
        %1338 = vmatprep.mubr.bf16.mxu0 %v745
        %1339 = vmatmul.mubr.bf16.gmra.mrb[0].mxu0 %v901
        %v1340 = vpop.f32.mrb[0].mxu0
        %v1341 = vadd.f32 0.0, %v1340
        %v1342 = vpop.f32.mrb[0].mxu0
        %v1343 = vpop.f32.mrb[0].mxu0
        %v1344 = vadd.f32 0.0, %v1343
        %v1345 = vpop.f32.mrb[0].mxu0
        %1346 = vmatprep.mubr.bf16.mxu0 %v746
        %1347 = vmatmul.mubr.bf16.gmra.mrb[0].mxu0 %v902
        %v1348 = vpop.f32.mrb[0].mxu0
        %v1349 = vadd.f32 0.0, %v1348
        %v1350 = vpop.f32.mrb[0].mxu0
        %v1351 = vpop.f32.mrb[0].mxu0
        %v1352 = vadd.f32 0.0, %v1351
        %v1353 = vpop.f32.mrb[0].mxu0
        %1354 = vmatprep.mubr.bf16.mxu0 %v747
        %1355 = vmatmul.mubr.bf16.gmra.mrb[0].mxu0 %v903
        %v1356 = vpop.f32.mrb[0].mxu0
        %v1357 = vadd.f32 0.0, %v1356
        %v1358 = vpop.f32.mrb[0].mxu0
        %v1359 = vpop.f32.mrb[0].mxu0
        %v1360 = vadd.f32 0.0, %v1359
        %v1361 = vpop.f32.mrb[0].mxu0
        %1362 = vmatprep.mubr.bf16.mxu0 %v748
        %1363 = vmatmul.mubr.bf16.gmra.mrb[0].mxu0 %v904
        %v1364 = vpop.f32.mrb[0].mxu0
        %v1365 = vadd.f32 0.0, %v1364
        %v1366 = vpop.f32.mrb[0].mxu0
        %v1367 = vpop.f32.mrb[0].mxu0
        %v1368 = vadd.f32 0.0, %v1367
        %v1369 = vpop.f32.mrb[0].mxu0
        %1370 = vmatprep.mubr.bf16.mxu0 %v749
        %1371 = vmatmul.mubr.bf16.gmra.mrb[0].mxu0 %v905
        %v1372 = vpop.f32.mrb[0].mxu0
        %v1373 = vadd.f32 0.0, %v1372
        %v1374 = vpop.f32.mrb[0].mxu0
        %v1375 = vpop.f32.mrb[0].mxu0
        %v1376 = vadd.f32 0.0, %v1375
        %v1377 = vpop.f32.mrb[0].mxu0
        %1378 = vdwg.mxu0
        %1379 = vmatprep.subr.bf16.mxu0 0
        %1380 = vmatpush1.bf16.msra.mxu0 %v1186
        %1381 = vmatprep.subr.bf16.mxu0 0
        %1382 = vmatpush1.bf16.msra.mxu0 %v1187
        %1383 = vmatprep.subr.bf16.mxu0 0
        %1384 = vmatpush1.bf16.msra.mxu0 %v1188
        %1385 = vmatprep.subr.bf16.mxu0 0
        %1386 = vmatpush1.bf16.msra.mxu0 %v1189
        %1387 = vmatprep.subr.bf16.mxu0 0
        %1388 = vmatpush1.bf16.msra.mxu0 %v1190
        %1389 = vmatprep.subr.bf16.mxu0 0
        %1390 = vmatpush1.bf16.msra.mxu0 %v1191
        %1391 = vmatprep.subr.bf16.mxu0 0
        %1392 = vmatpush1.bf16.msra.mxu0 %v1192
        %1393 = vmatprep.subr.bf16.mxu0 0
        %1394 = vmatpush1.bf16.msra.mxu0 %v1193
        %1395 = vmatprep.subr.bf16.mxu0 0
        %1396 = vmatpush1.bf16.msra.mxu0 0
        %1397 = vmatprep.subr.bf16.mxu0 0
        %1398 = vmatpush1.bf16.msra.mxu0 0
        %1399 = vmatprep.subr.bf16.mxu0 0
        %1400 = vmatpush1.bf16.msra.mxu0 0
        %1401 = vmatprep.subr.bf16.mxu0 0
        %1402 = vmatpush1.bf16.msra.mxu0 0
        %1403 = vmatprep.subr.bf16.mxu0 0
        %1404 = vmatpush1.bf16.msra.mxu0 0
        %1405 = vmatprep.subr.bf16.mxu0 0
        %1406 = vmatpush1.bf16.msra.mxu0 0
        %1407 = vmatprep.subr.bf16.mxu0 0
        %1408 = vmatpush1.bf16.msra.mxu0 0
        %1409 = vmatprep.subr.bf16.mxu0 0
        %1410 = vmatpush1.bf16.msra.mxu0 0
        %1411 = vmatprep.mubr.bf16.mxu0 0
        %1412 = vmatmul.mubr.bf16.gmra.mrb[0].mxu0 %v961
        %v1413 = vpop.f32.mrb[0].mxu0
        %v1414 = vadd.f32 %v1253, %v1413
        %v1415 = vpop.f32.mrb[0].mxu0
        %v1416 = vpop.f32.mrb[0].mxu0
        %v1417 = vadd.f32 %v1256, %v1416
        %v1418 = vpop.f32.mrb[0].mxu0
        %1419 = vmatprep.mubr.bf16.mxu0 0
        %1420 = vmatmul.mubr.bf16.gmra.mrb[0].mxu0 %v962
        %v1421 = vpop.f32.mrb[0].mxu0
        %v1422 = vadd.f32 %v1261, %v1421
        %v1423 = vpop.f32.mrb[0].mxu0
        %v1424 = vpop.f32.mrb[0].mxu0
        %v1425 = vadd.f32 %v1264, %v1424
        %v1426 = vpop.f32.mrb[0].mxu0
        %1427 = vmatprep.mubr.bf16.mxu0 0
        %1428 = vmatmul.mubr.bf16.gmra.mrb[0].mxu0 %v963
        %v1429 = vpop.f32.mrb[0].mxu0
        %v1430 = vadd.f32 %v1269, %v1429
        %v1431 = vpop.f32.mrb[0].mxu0
        %v1432 = vpop.f32.mrb[0].mxu0
        %v1433 = vadd.f32 %v1272, %v1432
        %v1434 = vpop.f32.mrb[0].mxu0
        %1435 = vmatprep.mubr.bf16.mxu0 0
        %1436 = vmatmul.mubr.bf16.gmra.mrb[0].mxu0 %v964
        %v1437 = vpop.f32.mrb[0].mxu0
        %v1438 = vadd.f32 %v1277, %v1437
        %v1439 = vpop.f32.mrb[0].mxu0
        %v1440 = vpop.f32.mrb[0].mxu0
        %v1441 = vadd.f32 %v1280, %v1440
        %v1442 = vpop.f32.mrb[0].mxu0
        %1443 = vmatprep.mubr.bf16.mxu0 0
        %1444 = vmatmul.mubr.bf16.gmra.mrb[0].mxu0 %v965
        %v1445 = vpop.f32.mrb[0].mxu0
        %v1446 = vadd.f32 %v1285, %v1445
        %v1447 = vpop.f32.mrb[0].mxu0
        %v1448 = vpop.f32.mrb[0].mxu0
        %v1449 = vadd.f32 %v1288, %v1448
        %v1450 = vpop.f32.mrb[0].mxu0
        %1451 = vmatprep.mubr.bf16.mxu0 0
        %1452 = vmatmul.mubr.bf16.gmra.mrb[0].mxu0 %v966
        %v1453 = vpop.f32.mrb[0].mxu0
        %v1454 = vadd.f32 %v1293, %v1453
        %v1455 = vpop.f32.mrb[0].mxu0
        %v1456 = vpop.f32.mrb[0].mxu0
        %v1457 = vadd.f32 %v1296, %v1456
        %v1458 = vpop.f32.mrb[0].mxu0
        %1459 = vmatprep.mubr.bf16.mxu0 0
        %1460 = vmatmul.mubr.bf16.gmra.mrb[0].mxu0 %v967
        %v1461 = vpop.f32.mrb[0].mxu0
        %v1462 = vadd.f32 %v1301, %v1461
        %v1463 = vpop.f32.mrb[0].mxu0
        %v1464 = vpop.f32.mrb[0].mxu0
        %v1465 = vadd.f32 %v1304, %v1464
        %v1466 = vpop.f32.mrb[0].mxu0
        %1467 = vmatprep.mubr.bf16.mxu0 0
        %1468 = vmatmul.mubr.bf16.gmra.mrb[0].mxu0 %v968
        %v1469 = vpop.f32.mrb[0].mxu0
        %v1470 = vadd.f32 %v1309, %v1469
        %v1471 = vpop.f32.mrb[0].mxu0
        %v1472 = vpop.f32.mrb[0].mxu0
        %v1473 = vadd.f32 %v1312, %v1472
        %v1474 = vpop.f32.mrb[0].mxu0
        %1475 = vmatprep.mubr.bf16.mxu0 0
        %1476 = vmatmul.mubr.bf16.gmra.mrb[0].mxu0 %v969
        %v1477 = vpop.f32.mrb[0].mxu0
        %v1478 = vadd.f32 %v1317, %v1477
        %v1479 = vpop.f32.mrb[0].mxu0
        %v1480 = vpop.f32.mrb[0].mxu0
        %v1481 = vadd.f32 %v1320, %v1480
        %v1482 = vpop.f32.mrb[0].mxu0
        %1483 = vmatprep.mubr.bf16.mxu0 0
        %1484 = vmatmul.mubr.bf16.gmra.mrb[0].mxu0 %v970
        %v1485 = vpop.f32.mrb[0].mxu0
        %v1486 = vadd.f32 %v1325, %v1485
        %v1487 = vpop.f32.mrb[0].mxu0
        %v1488 = vpop.f32.mrb[0].mxu0
        %v1489 = vadd.f32 %v1328, %v1488
        %v1490 = vpop.f32.mrb[0].mxu0
        %1491 = vmatprep.mubr.bf16.mxu0 0
        %1492 = vmatmul.mubr.bf16.gmra.mrb[0].mxu0 %v971
        %v1493 = vpop.f32.mrb[0].mxu0
        %v1494 = vadd.f32 %v1333, %v1493
        %v1495 = vpop.f32.mrb[0].mxu0
        %v1496 = vpop.f32.mrb[0].mxu0
        %v1497 = vadd.f32 %v1336, %v1496
        %v1498 = vpop.f32.mrb[0].mxu0
        %1499 = vmatprep.mubr.bf16.mxu0 0
        %1500 = vmatmul.mubr.bf16.gmra.mrb[0].mxu0 %v972
        %v1501 = vpop.f32.mrb[0].mxu0
        %v1502 = vadd.f32 %v1341, %v1501
        %v1503 = vpop.f32.mrb[0].mxu0
        %v1504 = vpop.f32.mrb[0].mxu0
        %v1505 = vadd.f32 %v1344, %v1504
        %v1506 = vpop.f32.mrb[0].mxu0
        %1507 = vmatprep.mubr.bf16.mxu0 0
        %1508 = vmatmul.mubr.bf16.gmra.mrb[0].mxu0 %v973
        %v1509 = vpop.f32.mrb[0].mxu0
        %v1510 = vadd.f32 %v1349, %v1509
        %v1511 = vpop.f32.mrb[0].mxu0
        %v1512 = vpop.f32.mrb[0].mxu0
        %v1513 = vadd.f32 %v1352, %v1512
        %v1514 = vpop.f32.mrb[0].mxu0
        %1515 = vmatprep.mubr.bf16.mxu0 0
        %1516 = vmatmul.mubr.bf16.gmra.mrb[0].mxu0 %v974
        %v1517 = vpop.f32.mrb[0].mxu0
        %v1518 = vadd.f32 %v1357, %v1517
        %v1519 = vpop.f32.mrb[0].mxu0
        %v1520 = vpop.f32.mrb[0].mxu0
        %v1521 = vadd.f32 %v1360, %v1520
        %v1522 = vpop.f32.mrb[0].mxu0
        %1523 = vmatprep.mubr.bf16.mxu0 0
        %1524 = vmatmul.mubr.bf16.gmra.mrb[0].mxu0 %v975
        %v1525 = vpop.f32.mrb[0].mxu0
        %v1526 = vadd.f32 %v1365, %v1525
        %v1527 = vpop.f32.mrb[0].mxu0
        %v1528 = vpop.f32.mrb[0].mxu0
        %v1529 = vadd.f32 %v1368, %v1528
        %v1530 = vpop.f32.mrb[0].mxu0
        %1531 = vmatprep.mubr.bf16.mxu0 0
        %1532 = vmatmul.mubr.bf16.gmra.mrb[0].mxu0 %v976
        %v1533 = vpop.f32.mrb[0].mxu0
        %v1534 = vadd.f32 %v1373, %v1533
        %v1535 = vpop.f32.mrb[0].mxu0
        %v1536 = vpop.f32.mrb[0].mxu0
        %v1537 = vadd.f32 %v1376, %v1536
        %v1538 = vpop.f32.mrb[0].mxu0
        %1539 = vdwg.mxu0
        %v1588 = vunpack.c.l.b16 %v977
        %v1589 = vunpack.c.l.b16 %v978
        %v1590 = vunpack.c.l.b16 %v979
        %v1591 = vunpack.c.l.b16 %v980
        %v1592 = vunpack.c.l.b16 %v981
        %v1593 = vunpack.c.l.b16 %v982
        %v1594 = vunpack.c.l.b16 %v983
        %v1595 = vunpack.c.l.b16 %v984
        %v1596 = vunpack.c.l.b16 %v985
        %v1597 = vunpack.c.l.b16 %v986
        %v1598 = vunpack.c.l.b16 %v987
        %v1599 = vunpack.c.l.b16 %v988
        %v1600 = vunpack.c.l.b16 %v989
        %v1601 = vunpack.c.l.b16 %v990
        %v1602 = vunpack.c.l.b16 %v991
        %v1603 = vunpack.c.l.b16 %v992
        %v1604 = vunpack.c.l.b16 %v993
        %v1605 = vunpack.c.l.b16 %v994
        %v1606 = vunpack.c.l.b16 %v995
        %v1607 = vunpack.c.l.b16 %v996
        %v1608 = vunpack.c.l.b16 %v997
        %v1609 = vunpack.c.l.b16 %v998
        %v1610 = vunpack.c.l.b16 %v999
        %v1611 = vunpack.c.l.b16 %v1000
        %v1612 = vunpack.c.l.b16 %v1001
        %v1613 = vunpack.c.l.b16 %v1002
        %v1614 = vunpack.c.l.b16 %v1003
        %v1615 = vunpack.c.l.b16 %v1004
        %v1616 = vunpack.c.l.b16 %v1005
        %v1617 = vunpack.c.l.b16 %v1006
        %v1618 = vunpack.c.l.b16 %v1007
        %v1619 = vunpack.c.l.b16 %v1008
        %v1620 = vunpack.c.l.b16 %v1009
        %v1621 = vunpack.c.l.b16 %v1010
        %v1622 = vunpack.c.l.b16 %v1011
        %v1623 = vunpack.c.l.b16 %v1012
        %v1624 = vunpack.c.l.b16 %v1013
        %v1625 = vunpack.c.l.b16 %v1014
        %v1626 = vunpack.c.l.b16 %v1015
        %v1627 = vunpack.c.l.b16 %v1016
        %v1628 = vunpack.c.l.b16 %v1017
        %v1629 = vunpack.c.l.b16 %v1018
        %v1630 = vunpack.c.l.b16 %v1019
        %v1631 = vunpack.c.l.b16 %v1020
        %v1632 = vunpack.c.l.b16 %v1021
        %v1633 = vunpack.c.l.b16 %v1022
        %v1634 = vunpack.c.l.b16 %v1023
        %v1635 = vunpack.c.l.b16 %v1024
        %v1636 = vpack.c.b16 %v1589, %v1588
        %v1637 = vpack.c.b16 %v1591, %v1590
        %v1638 = vpack.c.b16 %v1593, %v1592
        %v1639 = vpack.c.b16 %v1595, %v1594
        %v1640 = vpack.c.b16 %v1597, %v1596
        %v1641 = vpack.c.b16 %v1599, %v1598
        %v1642 = vpack.c.b16 %v1601, %v1600
        %v1643 = vpack.c.b16 %v1603, %v1602
        %v1644 = vpack.c.b16 %v1605, %v1604
        %v1645 = vpack.c.b16 %v1607, %v1606
        %v1646 = vpack.c.b16 %v1609, %v1608
        %v1647 = vpack.c.b16 %v1611, %v1610
        %v1648 = vpack.c.b16 %v1613, %v1612
        %v1649 = vpack.c.b16 %v1615, %v1614
        %v1650 = vpack.c.b16 %v1617, %v1616
        %v1651 = vpack.c.b16 %v1619, %v1618
        %v1652 = vpack.c.b16 %v1621, %v1620
        %v1653 = vpack.c.b16 %v1623, %v1622
        %v1654 = vpack.c.b16 %v1625, %v1624
        %v1655 = vpack.c.b16 %v1627, %v1626
        %v1656 = vpack.c.b16 %v1629, %v1628
        %v1657 = vpack.c.b16 %v1631, %v1630
        %v1658 = vpack.c.b16 %v1633, %v1632
        %v1659 = vpack.c.b16 %v1635, %v1634
        %1684 = vmatprep.subr.bf16.mxu0 0
        %1685 = vmatpush1.bf16.msra.mxu0 %v1636
        %1686 = vmatprep.subr.bf16.mxu0 0
        %1687 = vmatpush1.bf16.msra.mxu0 %v1637
        %1688 = vmatprep.subr.bf16.mxu0 0
        %1689 = vmatpush1.bf16.msra.mxu0 %v1638
        %1690 = vmatprep.subr.bf16.mxu0 0
        %1691 = vmatpush1.bf16.msra.mxu0 %v1639
        %1692 = vmatprep.subr.bf16.mxu0 0
        %1693 = vmatpush1.bf16.msra.mxu0 %v1640
        %1694 = vmatprep.subr.bf16.mxu0 0
        %1695 = vmatpush1.bf16.msra.mxu0 %v1641
        %1696 = vmatprep.subr.bf16.mxu0 0
        %1697 = vmatpush1.bf16.msra.mxu0 %v1642
        %1698 = vmatprep.subr.bf16.mxu0 0
        %1699 = vmatpush1.bf16.msra.mxu0 %v1643
        %1700 = vmatprep.subr.bf16.mxu0 0
        %1701 = vmatpush1.bf16.msra.mxu0 %v1644
        %1702 = vmatprep.subr.bf16.mxu0 0
        %1703 = vmatpush1.bf16.msra.mxu0 %v1645
        %1704 = vmatprep.subr.bf16.mxu0 0
        %1705 = vmatpush1.bf16.msra.mxu0 %v1646
        %1706 = vmatprep.subr.bf16.mxu0 0
        %1707 = vmatpush1.bf16.msra.mxu0 %v1647
        %1708 = vmatprep.subr.bf16.mxu0 0
        %1709 = vmatpush1.bf16.msra.mxu0 %v1648
        %1710 = vmatprep.subr.bf16.mxu0 0
        %1711 = vmatpush1.bf16.msra.mxu0 %v1649
        %1712 = vmatprep.subr.bf16.mxu0 0
        %1713 = vmatpush1.bf16.msra.mxu0 %v1650
        %1714 = vmatprep.subr.bf16.mxu0 0
        %1715 = vmatpush1.bf16.msra.mxu0 %v1651
        %1716 = vmatprep.mubr.bf16.mxu0 0
        %1717 = vmatmul.mubr.bf16.gmra.mrb[0].mxu0 %v889
        %v1718 = vpop.f32.mrb[0].mxu0
        %v1719 = vadd.f32 %v1414, %v1718
        %v1720 = vpop.f32.mrb[0].mxu0
        %v1721 = vpop.f32.mrb[0].mxu0
        %v1722 = vadd.f32 %v1417, %v1721
        %v1723 = vpop.f32.mrb[0].mxu0
        %1724 = vmatprep.mubr.bf16.mxu0 %v734
        %1725 = vmatmul.mubr.bf16.gmra.mrb[0].mxu0 %v890
        %v1726 = vpop.f32.mrb[0].mxu0
        %v1727 = vadd.f32 %v1422, %v1726
        %v1728 = vpop.f32.mrb[0].mxu0
        %v1729 = vpop.f32.mrb[0].mxu0
        %v1730 = vadd.f32 %v1425, %v1729
        %v1731 = vpop.f32.mrb[0].mxu0
        %1732 = vmatprep.mubr.bf16.mxu0 %v735
        %1733 = vmatmul.mubr.bf16.gmra.mrb[0].mxu0 %v891
        %v1734 = vpop.f32.mrb[0].mxu0
        %v1735 = vadd.f32 %v1430, %v1734
        %v1736 = vpop.f32.mrb[0].mxu0
        %v1737 = vpop.f32.mrb[0].mxu0
        %v1738 = vadd.f32 %v1433, %v1737
        %v1739 = vpop.f32.mrb[0].mxu0
        %1740 = vmatprep.mubr.bf16.mxu0 %v736
        %1741 = vmatmul.mubr.bf16.gmra.mrb[0].mxu0 %v892
        %v1742 = vpop.f32.mrb[0].mxu0
        %v1743 = vadd.f32 %v1438, %v1742
        %v1744 = vpop.f32.mrb[0].mxu0
        %v1745 = vpop.f32.mrb[0].mxu0
        %v1746 = vadd.f32 %v1441, %v1745
        %v1747 = vpop.f32.mrb[0].mxu0
        %1748 = vmatprep.mubr.bf16.mxu0 %v737
        %1749 = vmatmul.mubr.bf16.gmra.mrb[0].mxu0 %v893
        %v1750 = vpop.f32.mrb[0].mxu0
        %v1751 = vadd.f32 %v1446, %v1750
        %v1752 = vpop.f32.mrb[0].mxu0
        %v1753 = vpop.f32.mrb[0].mxu0
        %v1754 = vadd.f32 %v1449, %v1753
        %v1755 = vpop.f32.mrb[0].mxu0
        %1756 = vmatprep.mubr.bf16.mxu0 %v738
        %1757 = vmatmul.mubr.bf16.gmra.mrb[0].mxu0 %v894
        %v1758 = vpop.f32.mrb[0].mxu0
        %v1759 = vadd.f32 %v1454, %v1758
        %v1760 = vpop.f32.mrb[0].mxu0
        %v1761 = vpop.f32.mrb[0].mxu0
        %v1762 = vadd.f32 %v1457, %v1761
        %v1763 = vpop.f32.mrb[0].mxu0
        %1764 = vmatprep.mubr.bf16.mxu0 %v739
        %1765 = vmatmul.mubr.bf16.gmra.mrb[0].mxu0 %v895
        %v1766 = vpop.f32.mrb[0].mxu0
        %v1767 = vadd.f32 %v1462, %v1766
        %v1768 = vpop.f32.mrb[0].mxu0
        %v1769 = vpop.f32.mrb[0].mxu0
        %v1770 = vadd.f32 %v1465, %v1769
        %v1771 = vpop.f32.mrb[0].mxu0
        %1772 = vmatprep.mubr.bf16.mxu0 %v740
        %1773 = vmatmul.mubr.bf16.gmra.mrb[0].mxu0 %v896
        %v1774 = vpop.f32.mrb[0].mxu0
        %v1775 = vadd.f32 %v1470, %v1774
        %v1776 = vpop.f32.mrb[0].mxu0
        %v1777 = vpop.f32.mrb[0].mxu0
        %v1778 = vadd.f32 %v1473, %v1777
        %v1779 = vpop.f32.mrb[0].mxu0
        %1780 = vmatprep.mubr.bf16.mxu0 %v741
        %1781 = vmatmul.mubr.bf16.gmra.mrb[0].mxu0 %v897
        %v1782 = vpop.f32.mrb[0].mxu0
        %v1783 = vadd.f32 %v1478, %v1782
        %v1784 = vpop.f32.mrb[0].mxu0
        %v1785 = vpop.f32.mrb[0].mxu0
        %v1786 = vadd.f32 %v1481, %v1785
        %v1787 = vpop.f32.mrb[0].mxu0
        %1788 = vmatprep.mubr.bf16.mxu0 %v742
        %1789 = vmatmul.mubr.bf16.gmra.mrb[0].mxu0 %v898
        %v1790 = vpop.f32.mrb[0].mxu0
        %v1791 = vadd.f32 %v1486, %v1790
        %v1792 = vpop.f32.mrb[0].mxu0
        %v1793 = vpop.f32.mrb[0].mxu0
        %v1794 = vadd.f32 %v1489, %v1793
        %v1795 = vpop.f32.mrb[0].mxu0
        %1796 = vmatprep.mubr.bf16.mxu0 %v743
        %1797 = vmatmul.mubr.bf16.gmra.mrb[0].mxu0 %v899
        %v1798 = vpop.f32.mrb[0].mxu0
        %v1799 = vadd.f32 %v1494, %v1798
        %v1800 = vpop.f32.mrb[0].mxu0
        %v1801 = vpop.f32.mrb[0].mxu0
        %v1802 = vadd.f32 %v1497, %v1801
        %v1803 = vpop.f32.mrb[0].mxu0
        %1804 = vmatprep.mubr.bf16.mxu0 %v744
        %1805 = vmatmul.mubr.bf16.gmra.mrb[0].mxu0 %v900
        %v1806 = vpop.f32.mrb[0].mxu0
        %v1807 = vadd.f32 %v1502, %v1806
        %v1808 = vpop.f32.mrb[0].mxu0
        %v1809 = vpop.f32.mrb[0].mxu0
        %v1810 = vadd.f32 %v1505, %v1809
        %v1811 = vpop.f32.mrb[0].mxu0
        %1812 = vmatprep.mubr.bf16.mxu0 %v745
        %1813 = vmatmul.mubr.bf16.gmra.mrb[0].mxu0 %v901
        %v1814 = vpop.f32.mrb[0].mxu0
        %v1815 = vadd.f32 %v1510, %v1814
        %v1816 = vpop.f32.mrb[0].mxu0
        %v1817 = vpop.f32.mrb[0].mxu0
        %v1818 = vadd.f32 %v1513, %v1817
        %v1819 = vpop.f32.mrb[0].mxu0
        %1820 = vmatprep.mubr.bf16.mxu0 %v746
        %1821 = vmatmul.mubr.bf16.gmra.mrb[0].mxu0 %v902
        %v1822 = vpop.f32.mrb[0].mxu0
        %v1823 = vadd.f32 %v1518, %v1822
        %v1824 = vpop.f32.mrb[0].mxu0
        %v1825 = vpop.f32.mrb[0].mxu0
        %v1826 = vadd.f32 %v1521, %v1825
        %v1827 = vpop.f32.mrb[0].mxu0
        %1828 = vmatprep.mubr.bf16.mxu0 %v747
        %1829 = vmatmul.mubr.bf16.gmra.mrb[0].mxu0 %v903
        %v1830 = vpop.f32.mrb[0].mxu0
        %v1831 = vadd.f32 %v1526, %v1830
        %v1832 = vpop.f32.mrb[0].mxu0
        %v1833 = vpop.f32.mrb[0].mxu0
        %v1834 = vadd.f32 %v1529, %v1833
        %v1835 = vpop.f32.mrb[0].mxu0
        %1836 = vmatprep.mubr.bf16.mxu0 %v748
        %1837 = vmatmul.mubr.bf16.gmra.mrb[0].mxu0 %v904
        %v1838 = vpop.f32.mrb[0].mxu0
        %v1839 = vadd.f32 %v1534, %v1838
        %v1840 = vpop.f32.mrb[0].mxu0
        %v1841 = vpop.f32.mrb[0].mxu0
        %v1842 = vadd.f32 %v1537, %v1841
        %v1843 = vpop.f32.mrb[0].mxu0
        %1844 = vdwg.mxu0
        %1845 = vmatprep.subr.bf16.mxu0 0
        %1846 = vmatpush1.bf16.msra.mxu0 %v1652
        %1847 = vmatprep.subr.bf16.mxu0 0
        %1848 = vmatpush1.bf16.msra.mxu0 %v1653
        %1849 = vmatprep.subr.bf16.mxu0 0
        %1850 = vmatpush1.bf16.msra.mxu0 %v1654
        %1851 = vmatprep.subr.bf16.mxu0 0
        %1852 = vmatpush1.bf16.msra.mxu0 %v1655
        %1853 = vmatprep.subr.bf16.mxu0 0
        %1854 = vmatpush1.bf16.msra.mxu0 %v1656
        %1855 = vmatprep.subr.bf16.mxu0 0
        %1856 = vmatpush1.bf16.msra.mxu0 %v1657
        %1857 = vmatprep.subr.bf16.mxu0 0
        %1858 = vmatpush1.bf16.msra.mxu0 %v1658
        %1859 = vmatprep.subr.bf16.mxu0 0
        %1860 = vmatpush1.bf16.msra.mxu0 %v1659
        %1861 = vmatprep.subr.bf16.mxu0 0
        %1862 = vmatpush1.bf16.msra.mxu0 0
        %1863 = vmatprep.subr.bf16.mxu0 0
        %1864 = vmatpush1.bf16.msra.mxu0 0
        %1865 = vmatprep.subr.bf16.mxu0 0
        %1866 = vmatpush1.bf16.msra.mxu0 0
        %1867 = vmatprep.subr.bf16.mxu0 0
        %1868 = vmatpush1.bf16.msra.mxu0 0
        %1869 = vmatprep.subr.bf16.mxu0 0
        %1870 = vmatpush1.bf16.msra.mxu0 0
        %1871 = vmatprep.subr.bf16.mxu0 0
        %1872 = vmatpush1.bf16.msra.mxu0 0
        %1873 = vmatprep.subr.bf16.mxu0 0
        %1874 = vmatpush1.bf16.msra.mxu0 0
        %1875 = vmatprep.subr.bf16.mxu0 0
        %1876 = vmatpush1.bf16.msra.mxu0 0
        %1877 = vmatprep.mubr.bf16.mxu0 0
        %1878 = vmatmul.mubr.bf16.gmra.mrb[0].mxu0 %v960
        %v1879 = vpop.f32.mrb[0].mxu0
        %v1880 = vadd.f32 %v1719, %v1879
        %v1881 = vpop.f32.mrb[0].mxu0
        %v1882 = vpop.f32.mrb[0].mxu0
        %v1883 = vadd.f32 %v1722, %v1882
        %v1884 = vpop.f32.mrb[0].mxu0
        %1885 = vmatprep.mubr.bf16.mxu0 0
        %1886 = vmatmul.mubr.bf16.gmra.mrb[0].mxu0 %v961
        %v1887 = vpop.f32.mrb[0].mxu0
        %v1888 = vadd.f32 %v1727, %v1887
        %v1889 = vpop.f32.mrb[0].mxu0
        %v1890 = vpop.f32.mrb[0].mxu0
        %v1891 = vadd.f32 %v1730, %v1890
        %v1892 = vpop.f32.mrb[0].mxu0
        %1893 = vmatprep.mubr.bf16.mxu0 0
        %1894 = vmatmul.mubr.bf16.gmra.mrb[0].mxu0 %v962
        %v1895 = vpop.f32.mrb[0].mxu0
        %v1896 = vadd.f32 %v1735, %v1895
        %v1897 = vpop.f32.mrb[0].mxu0
        %v1898 = vpop.f32.mrb[0].mxu0
        %v1899 = vadd.f32 %v1738, %v1898
        %v1900 = vpop.f32.mrb[0].mxu0
        %1901 = vmatprep.mubr.bf16.mxu0 0
        %1902 = vmatmul.mubr.bf16.gmra.mrb[0].mxu0 %v963
        %v1903 = vpop.f32.mrb[0].mxu0
        %v1904 = vadd.f32 %v1743, %v1903
        %v1905 = vpop.f32.mrb[0].mxu0
        %v1906 = vpop.f32.mrb[0].mxu0
        %v1907 = vadd.f32 %v1746, %v1906
        %v1908 = vpop.f32.mrb[0].mxu0
        %1909 = vmatprep.mubr.bf16.mxu0 0
        %1910 = vmatmul.mubr.bf16.gmra.mrb[0].mxu0 %v964
        %v1911 = vpop.f32.mrb[0].mxu0
        %v1912 = vadd.f32 %v1751, %v1911
        %v1913 = vpop.f32.mrb[0].mxu0
        %v1914 = vpop.f32.mrb[0].mxu0
        %v1915 = vadd.f32 %v1754, %v1914
        %v1916 = vpop.f32.mrb[0].mxu0
        %1917 = vmatprep.mubr.bf16.mxu0 0
        %1918 = vmatmul.mubr.bf16.gmra.mrb[0].mxu0 %v965
        %v1919 = vpop.f32.mrb[0].mxu0
        %v1920 = vadd.f32 %v1759, %v1919
        %v1921 = vpop.f32.mrb[0].mxu0
        %v1922 = vpop.f32.mrb[0].mxu0
        %v1923 = vadd.f32 %v1762, %v1922
        %v1924 = vpop.f32.mrb[0].mxu0
        %1925 = vmatprep.mubr.bf16.mxu0 0
        %1926 = vmatmul.mubr.bf16.gmra.mrb[0].mxu0 %v966
        %v1927 = vpop.f32.mrb[0].mxu0
        %v1928 = vadd.f32 %v1767, %v1927
        %v1929 = vpop.f32.mrb[0].mxu0
        %v1930 = vpop.f32.mrb[0].mxu0
        %v1931 = vadd.f32 %v1770, %v1930
        %v1932 = vpop.f32.mrb[0].mxu0
        %1933 = vmatprep.mubr.bf16.mxu0 0
        %1934 = vmatmul.mubr.bf16.gmra.mrb[0].mxu0 %v967
        %v1935 = vpop.f32.mrb[0].mxu0
        %v1936 = vadd.f32 %v1775, %v1935
        %v1937 = vpop.f32.mrb[0].mxu0
        %v1938 = vpop.f32.mrb[0].mxu0
        %v1939 = vadd.f32 %v1778, %v1938
        %v1940 = vpop.f32.mrb[0].mxu0
        %1941 = vmatprep.mubr.bf16.mxu0 0
        %1942 = vmatmul.mubr.bf16.gmra.mrb[0].mxu0 %v968
        %v1943 = vpop.f32.mrb[0].mxu0
        %v1944 = vadd.f32 %v1783, %v1943
        %v1945 = vpop.f32.mrb[0].mxu0
        %v1946 = vpop.f32.mrb[0].mxu0
        %v1947 = vadd.f32 %v1786, %v1946
        %v1948 = vpop.f32.mrb[0].mxu0
        %1949 = vmatprep.mubr.bf16.mxu0 0
        %1950 = vmatmul.mubr.bf16.gmra.mrb[0].mxu0 %v969
        %v1951 = vpop.f32.mrb[0].mxu0
        %v1952 = vadd.f32 %v1791, %v1951
        %v1953 = vpop.f32.mrb[0].mxu0
        %v1954 = vpop.f32.mrb[0].mxu0
        %v1955 = vadd.f32 %v1794, %v1954
        %v1956 = vpop.f32.mrb[0].mxu0
        %1957 = vmatprep.mubr.bf16.mxu0 0
        %1958 = vmatmul.mubr.bf16.gmra.mrb[0].mxu0 %v970
        %v1959 = vpop.f32.mrb[0].mxu0
        %v1960 = vadd.f32 %v1799, %v1959
        %v1961 = vpop.f32.mrb[0].mxu0
        %v1962 = vpop.f32.mrb[0].mxu0
        %v1963 = vadd.f32 %v1802, %v1962
        %v1964 = vpop.f32.mrb[0].mxu0
        %1965 = vmatprep.mubr.bf16.mxu0 0
        %1966 = vmatmul.mubr.bf16.gmra.mrb[0].mxu0 %v971
        %v1967 = vpop.f32.mrb[0].mxu0
        %v1968 = vadd.f32 %v1807, %v1967
        %v1969 = vpop.f32.mrb[0].mxu0
        %v1970 = vpop.f32.mrb[0].mxu0
        %v1971 = vadd.f32 %v1810, %v1970
        %v1972 = vpop.f32.mrb[0].mxu0
        %1973 = vmatprep.mubr.bf16.mxu0 0
        %1974 = vmatmul.mubr.bf16.gmra.mrb[0].mxu0 %v972
        %v1975 = vpop.f32.mrb[0].mxu0
        %v1976 = vadd.f32 %v1815, %v1975
        %v1977 = vpop.f32.mrb[0].mxu0
        %v1978 = vpop.f32.mrb[0].mxu0
        %v1979 = vadd.f32 %v1818, %v1978
        %v1980 = vpop.f32.mrb[0].mxu0
        %1981 = vmatprep.mubr.bf16.mxu0 0
        %1982 = vmatmul.mubr.bf16.gmra.mrb[0].mxu0 %v973
        %v1983 = vpop.f32.mrb[0].mxu0
        %v1984 = vadd.f32 %v1823, %v1983
        %v1985 = vpop.f32.mrb[0].mxu0
        %v1986 = vpop.f32.mrb[0].mxu0
        %v1987 = vadd.f32 %v1826, %v1986
        %v1988 = vpop.f32.mrb[0].mxu0
        %1989 = vmatprep.mubr.bf16.mxu0 0
        %1990 = vmatmul.mubr.bf16.gmra.mrb[0].mxu0 %v974
        %v1991 = vpop.f32.mrb[0].mxu0
        %v1992 = vadd.f32 %v1831, %v1991
        %v1993 = vpop.f32.mrb[0].mxu0
        %v1994 = vpop.f32.mrb[0].mxu0
        %v1995 = vadd.f32 %v1834, %v1994
        %v1996 = vpop.f32.mrb[0].mxu0
        %1997 = vmatprep.mubr.bf16.mxu0 0
        %1998 = vmatmul.mubr.bf16.gmra.mrb[0].mxu0 %v975
        %v1999 = vpop.f32.mrb[0].mxu0
        %v2000 = vadd.f32 %v1839, %v1999
        %v2001 = vpop.f32.mrb[0].mxu0
        %v2002 = vpop.f32.mrb[0].mxu0
        %v2003 = vadd.f32 %v1842, %v2002
        %v2004 = vpop.f32.mrb[0].mxu0
        %2005 = vdwg.mxu0
        %s2006 = scalar_lea.vmem [#allocation7], 384
        %v2007 = vld [vmem:[%s2006] sm:$0xf]
        %v2008 = vld [vmem:[%s2006 + $0x4] sm:$0xf]
        %v2009 = vld [vmem:[%s2006 + $0x8] sm:$0xf]
        %v2010 = vld [vmem:[%s2006 + $0xc] sm:$0xf]
        %v2011 = vld [vmem:[%s2006 + $0x10] sm:$0xf]
        %v2012 = vld [vmem:[%s2006 + $0x14] sm:$0xf]
        %v2013 = vld [vmem:[%s2006 + $0x18] sm:$0xf]
        %v2014 = vld [vmem:[%s2006 + $0x1c] sm:$0xf]
        %v2015 = vld [vmem:[%s2006 + $0x20] sm:$0xf]
        %v2016 = vld [vmem:[%s2006 + $0x24] sm:$0xf]
        %v2017 = vld [vmem:[%s2006 + $0x28] sm:$0xf]
        %v2018 = vld [vmem:[%s2006 + $0x2c] sm:$0xf]
        %v2019 = vld [vmem:[%s2006 + $0x30] sm:$0xf]
        %v2020 = vld [vmem:[%s2006 + $0x34] sm:$0xf]
        %v2021 = vld [vmem:[%s2006 + $0x38] sm:$0xf]
        %v2022 = vld [vmem:[%s2006 + $0x3c] sm:$0xf]
        %v2023 = vld [vmem:[%s2006 + $0x40] sm:$0xf]
        %v2024 = vld [vmem:[%s2006 + $0x44] sm:$0xf]
        %v2025 = vld [vmem:[%s2006 + $0x48] sm:$0xf]
        %v2026 = vld [vmem:[%s2006 + $0x4c] sm:$0xf]
        %v2027 = vld [vmem:[%s2006 + $0x50] sm:$0xf]
        %v2028 = vld [vmem:[%s2006 + $0x54] sm:$0xf]
        %v2029 = vld [vmem:[%s2006 + $0x58] sm:$0xf]
        %v2030 = vld [vmem:[%s2006 + $0x5c] sm:$0xf]
        %v2031 = vld [vmem:[%s2006 + $0x60] sm:$0xf]
        %v2032 = vld [vmem:[%s2006 + $0x64] sm:$0xf]
        %v2033 = vld [vmem:[%s2006 + $0x68] sm:$0xf]
        %v2034 = vld [vmem:[%s2006 + $0x6c] sm:$0xf]
        %v2035 = vld [vmem:[%s2006 + $0x70] sm:$0xf]
        %v2036 = vld [vmem:[%s2006 + $0x74] sm:$0xf]
        %v2037 = vld [vmem:[%s2006 + $0x78] sm:$0xf]
        %v2038 = vld [vmem:[%s2006 + $0x7c] sm:$0xf]
        %v2039 = vld [vmem:[%s2006 + $0x80] sm:$0xf]
        %v2040 = vld [vmem:[%s2006 + $0x84] sm:$0xf]
        %v2041 = vld [vmem:[%s2006 + $0x88] sm:$0xf]
        %v2042 = vld [vmem:[%s2006 + $0x8c] sm:$0xf]
        %v2043 = vld [vmem:[%s2006 + $0x90] sm:$0xf]
        %v2044 = vld [vmem:[%s2006 + $0x94] sm:$0xf]
        %v2045 = vld [vmem:[%s2006 + $0x98] sm:$0xf]
        %v2046 = vld [vmem:[%s2006 + $0x9c] sm:$0xf]
        %v2047 = vld [vmem:[%s2006 + $0xa0] sm:$0xf]
        %v2048 = vld [vmem:[%s2006 + $0xa4] sm:$0xf]
        %v2049 = vld [vmem:[%s2006 + $0xa8] sm:$0xf]
        %v2050 = vld [vmem:[%s2006 + $0xac] sm:$0xf]
        %v2051 = vld [vmem:[%s2006 + $0xb0] sm:$0xf]
        %v2052 = vld [vmem:[%s2006 + $0xb4] sm:$0xf]
        %v2053 = vld [vmem:[%s2006 + $0xb8] sm:$0xf]
        %v2054 = vld [vmem:[%s2006 + $0xbc] sm:$0xf]
        %v2103 = vunpack.c.l.b16 %v2007
        %v2104 = vunpack.c.l.b16 %v2008
        %v2105 = vunpack.c.l.b16 %v2009
        %v2106 = vunpack.c.l.b16 %v2010
        %v2107 = vunpack.c.l.b16 %v2011
        %v2108 = vunpack.c.l.b16 %v2012
        %v2109 = vunpack.c.l.b16 %v2013
        %v2110 = vunpack.c.l.b16 %v2014
        %v2111 = vunpack.c.l.b16 %v2015
        %v2112 = vunpack.c.l.b16 %v2016
        %v2113 = vunpack.c.l.b16 %v2017
        %v2114 = vunpack.c.l.b16 %v2018
        %v2115 = vunpack.c.l.b16 %v2019
        %v2116 = vunpack.c.l.b16 %v2020
        %v2117 = vunpack.c.l.b16 %v2021
        %v2118 = vunpack.c.l.b16 %v2022
        %v2119 = vunpack.c.l.b16 %v2023
        %v2120 = vunpack.c.l.b16 %v2024
        %v2121 = vunpack.c.l.b16 %v2025
        %v2122 = vunpack.c.l.b16 %v2026
        %v2123 = vunpack.c.l.b16 %v2027
        %v2124 = vunpack.c.l.b16 %v2028
        %v2125 = vunpack.c.l.b16 %v2029
        %v2126 = vunpack.c.l.b16 %v2030
        %v2127 = vunpack.c.l.b16 %v2031
        %v2128 = vunpack.c.l.b16 %v2032
        %v2129 = vunpack.c.l.b16 %v2033
        %v2130 = vunpack.c.l.b16 %v2034
        %v2131 = vunpack.c.l.b16 %v2035
        %v2132 = vunpack.c.l.b16 %v2036
        %v2133 = vunpack.c.l.b16 %v2037
        %v2134 = vunpack.c.l.b16 %v2038
        %v2135 = vunpack.c.l.b16 %v2039
        %v2136 = vunpack.c.l.b16 %v2040
        %v2137 = vunpack.c.l.b16 %v2041
        %v2138 = vunpack.c.l.b16 %v2042
        %v2139 = vunpack.c.l.b16 %v2043
        %v2140 = vunpack.c.l.b16 %v2044
        %v2141 = vunpack.c.l.b16 %v2045
        %v2142 = vunpack.c.l.b16 %v2046
        %v2143 = vunpack.c.l.b16 %v2047
        %v2144 = vunpack.c.l.b16 %v2048
        %v2145 = vunpack.c.l.b16 %v2049
        %v2146 = vunpack.c.l.b16 %v2050
        %v2147 = vunpack.c.l.b16 %v2051
        %v2148 = vunpack.c.l.b16 %v2052
        %v2149 = vunpack.c.l.b16 %v2053
        %v2150 = vunpack.c.l.b16 %v2054
        %v2151 = vpack.c.b16 %v2104, %v2103
        %v2152 = vpack.c.b16 %v2106, %v2105
        %v2153 = vpack.c.b16 %v2108, %v2107
        %v2154 = vpack.c.b16 %v2110, %v2109
        %v2155 = vpack.c.b16 %v2112, %v2111
        %v2156 = vpack.c.b16 %v2114, %v2113
        %v2157 = vpack.c.b16 %v2116, %v2115
        %v2158 = vpack.c.b16 %v2118, %v2117
        %v2159 = vpack.c.b16 %v2120, %v2119
        %v2160 = vpack.c.b16 %v2122, %v2121
        %v2161 = vpack.c.b16 %v2124, %v2123
        %v2162 = vpack.c.b16 %v2126, %v2125
        %v2163 = vpack.c.b16 %v2128, %v2127
        %v2164 = vpack.c.b16 %v2130, %v2129
        %v2165 = vpack.c.b16 %v2132, %v2131
        %v2166 = vpack.c.b16 %v2134, %v2133
        %v2167 = vpack.c.b16 %v2136, %v2135
        %v2168 = vpack.c.b16 %v2138, %v2137
        %v2169 = vpack.c.b16 %v2140, %v2139
        %v2170 = vpack.c.b16 %v2142, %v2141
        %v2171 = vpack.c.b16 %v2144, %v2143
        %v2172 = vpack.c.b16 %v2146, %v2145
        %v2173 = vpack.c.b16 %v2148, %v2147
        %v2174 = vpack.c.b16 %v2150, %v2149
        %2199 = vmatprep.subr.bf16.mxu0 0
        %2200 = vmatpush1.bf16.msra.mxu0 %v2151
        %2201 = vmatprep.subr.bf16.mxu0 0
        %2202 = vmatpush1.bf16.msra.mxu0 %v2152
        %2203 = vmatprep.subr.bf16.mxu0 0
        %2204 = vmatpush1.bf16.msra.mxu0 %v2153
        %2205 = vmatprep.subr.bf16.mxu0 0
        %2206 = vmatpush1.bf16.msra.mxu0 %v2154
        %2207 = vmatprep.subr.bf16.mxu0 0
        %2208 = vmatpush1.bf16.msra.mxu0 %v2155
        %2209 = vmatprep.subr.bf16.mxu0 0
        %2210 = vmatpush1.bf16.msra.mxu0 %v2156
        %2211 = vmatprep.subr.bf16.mxu0 0
        %2212 = vmatpush1.bf16.msra.mxu0 %v2157
        %2213 = vmatprep.subr.bf16.mxu0 0
        %2214 = vmatpush1.bf16.msra.mxu0 %v2158
        %2215 = vmatprep.subr.bf16.mxu0 0
        %2216 = vmatpush1.bf16.msra.mxu0 %v2159
        %2217 = vmatprep.subr.bf16.mxu0 0
        %2218 = vmatpush1.bf16.msra.mxu0 %v2160
        %2219 = vmatprep.subr.bf16.mxu0 0
        %2220 = vmatpush1.bf16.msra.mxu0 %v2161
        %2221 = vmatprep.subr.bf16.mxu0 0
        %2222 = vmatpush1.bf16.msra.mxu0 %v2162
        %2223 = vmatprep.subr.bf16.mxu0 0
        %2224 = vmatpush1.bf16.msra.mxu0 %v2163
        %2225 = vmatprep.subr.bf16.mxu0 0
        %2226 = vmatpush1.bf16.msra.mxu0 %v2164
        %2227 = vmatprep.subr.bf16.mxu0 0
        %2228 = vmatpush1.bf16.msra.mxu0 %v2165
        %2229 = vmatprep.subr.bf16.mxu0 0
        %2230 = vmatpush1.bf16.msra.mxu0 %v2166
        %2231 = vmatprep.mubr.bf16.mxu0 %v735
        %2232 = vmatmul.mubr.bf16.gmra.mrb[0].mxu0 %v891
        %v2233 = vpop.f32.mrb[0].mxu0
        %v2234 = vadd.f32 0.0, %v2233
        %v2235 = vpop.f32.mrb[0].mxu0
        %v2236 = vpop.f32.mrb[0].mxu0
        %v2237 = vadd.f32 0.0, %v2236
        %v2238 = vpop.f32.mrb[0].mxu0
        %2239 = vmatprep.mubr.bf16.mxu0 %v736
        %2240 = vmatmul.mubr.bf16.gmra.mrb[0].mxu0 %v892
        %v2241 = vpop.f32.mrb[0].mxu0
        %v2242 = vadd.f32 0.0, %v2241
        %v2243 = vpop.f32.mrb[0].mxu0
        %v2244 = vpop.f32.mrb[0].mxu0
        %v2245 = vadd.f32 0.0, %v2244
        %v2246 = vpop.f32.mrb[0].mxu0
        %2247 = vmatprep.mubr.bf16.mxu0 %v737
        %2248 = vmatmul.mubr.bf16.gmra.mrb[0].mxu0 %v893
        %v2249 = vpop.f32.mrb[0].mxu0
        %v2250 = vadd.f32 0.0, %v2249
        %v2251 = vpop.f32.mrb[0].mxu0
        %v2252 = vpop.f32.mrb[0].mxu0
        %v2253 = vadd.f32 0.0, %v2252
        %v2254 = vpop.f32.mrb[0].mxu0
        %2255 = vmatprep.mubr.bf16.mxu0 %v738
        %2256 = vmatmul.mubr.bf16.gmra.mrb[0].mxu0 %v894
        %v2257 = vpop.f32.mrb[0].mxu0
        %v2258 = vadd.f32 0.0, %v2257
        %v2259 = vpop.f32.mrb[0].mxu0
        %v2260 = vpop.f32.mrb[0].mxu0
        %v2261 = vadd.f32 0.0, %v2260
        %v2262 = vpop.f32.mrb[0].mxu0
        %2263 = vmatprep.mubr.bf16.mxu0 %v739
        %2264 = vmatmul.mubr.bf16.gmra.mrb[0].mxu0 %v895
        %v2265 = vpop.f32.mrb[0].mxu0
        %v2266 = vadd.f32 0.0, %v2265
        %v2267 = vpop.f32.mrb[0].mxu0
        %v2268 = vpop.f32.mrb[0].mxu0
        %v2269 = vadd.f32 0.0, %v2268
        %v2270 = vpop.f32.mrb[0].mxu0
        %2271 = vmatprep.mubr.bf16.mxu0 %v740
        %2272 = vmatmul.mubr.bf16.gmra.mrb[0].mxu0 %v896
        %v2273 = vpop.f32.mrb[0].mxu0
        %v2274 = vadd.f32 0.0, %v2273
        %v2275 = vpop.f32.mrb[0].mxu0
        %v2276 = vpop.f32.mrb[0].mxu0
        %v2277 = vadd.f32 0.0, %v2276
        %v2278 = vpop.f32.mrb[0].mxu0
        %2279 = vmatprep.mubr.bf16.mxu0 %v741
        %2280 = vmatmul.mubr.bf16.gmra.mrb[0].mxu0 %v897
        %v2281 = vpop.f32.mrb[0].mxu0
        %v2282 = vadd.f32 0.0, %v2281
        %v2283 = vpop.f32.mrb[0].mxu0
        %v2284 = vpop.f32.mrb[0].mxu0
        %v2285 = vadd.f32 0.0, %v2284
        %v2286 = vpop.f32.mrb[0].mxu0
        %2287 = vmatprep.mubr.bf16.mxu0 %v742
        %2288 = vmatmul.mubr.bf16.gmra.mrb[0].mxu0 %v898
        %v2289 = vpop.f32.mrb[0].mxu0
        %v2290 = vadd.f32 0.0, %v2289
        %v2291 = vpop.f32.mrb[0].mxu0
        %v2292 = vpop.f32.mrb[0].mxu0
        %v2293 = vadd.f32 0.0, %v2292
        %v2294 = vpop.f32.mrb[0].mxu0
        %2295 = vmatprep.mubr.bf16.mxu0 %v743
        %2296 = vmatmul.mubr.bf16.gmra.mrb[0].mxu0 %v899
        %v2297 = vpop.f32.mrb[0].mxu0
        %v2298 = vadd.f32 0.0, %v2297
        %v2299 = vpop.f32.mrb[0].mxu0
        %v2300 = vpop.f32.mrb[0].mxu0
        %v2301 = vadd.f32 0.0, %v2300
        %v2302 = vpop.f32.mrb[0].mxu0
        %2303 = vmatprep.mubr.bf16.mxu0 %v744
        %2304 = vmatmul.mubr.bf16.gmra.mrb[0].mxu0 %v900
        %v2305 = vpop.f32.mrb[0].mxu0
        %v2306 = vadd.f32 0.0, %v2305
        %v2307 = vpop.f32.mrb[0].mxu0
        %v2308 = vpop.f32.mrb[0].mxu0
        %v2309 = vadd.f32 0.0, %v2308
        %v2310 = vpop.f32.mrb[0].mxu0
        %2311 = vmatprep.mubr.bf16.mxu0 %v745
        %2312 = vmatmul.mubr.bf16.gmra.mrb[0].mxu0 %v901
        %v2313 = vpop.f32.mrb[0].mxu0
        %v2314 = vadd.f32 0.0, %v2313
        %v2315 = vpop.f32.mrb[0].mxu0
        %v2316 = vpop.f32.mrb[0].mxu0
        %v2317 = vadd.f32 0.0, %v2316
        %v2318 = vpop.f32.mrb[0].mxu0
        %2319 = vmatprep.mubr.bf16.mxu0 %v746
        %2320 = vmatmul.mubr.bf16.gmra.mrb[0].mxu0 %v902
        %v2321 = vpop.f32.mrb[0].mxu0
        %v2322 = vadd.f32 0.0, %v2321
        %v2323 = vpop.f32.mrb[0].mxu0
        %v2324 = vpop.f32.mrb[0].mxu0
        %v2325 = vadd.f32 0.0, %v2324
        %v2326 = vpop.f32.mrb[0].mxu0
        %2327 = vmatprep.mubr.bf16.mxu0 %v747
        %2328 = vmatmul.mubr.bf16.gmra.mrb[0].mxu0 %v903
        %v2329 = vpop.f32.mrb[0].mxu0
        %v2330 = vadd.f32 0.0, %v2329
        %v2331 = vpop.f32.mrb[0].mxu0
        %v2332 = vpop.f32.mrb[0].mxu0
        %v2333 = vadd.f32 0.0, %v2332
        %v2334 = vpop.f32.mrb[0].mxu0
        %2335 = vmatprep.mubr.bf16.mxu0 %v748
        %2336 = vmatmul.mubr.bf16.gmra.mrb[0].mxu0 %v904
        %v2337 = vpop.f32.mrb[0].mxu0
        %v2338 = vadd.f32 0.0, %v2337
        %v2339 = vpop.f32.mrb[0].mxu0
        %v2340 = vpop.f32.mrb[0].mxu0
        %v2341 = vadd.f32 0.0, %v2340
        %v2342 = vpop.f32.mrb[0].mxu0
        %2343 = vmatprep.mubr.bf16.mxu0 %v749
        %2344 = vmatmul.mubr.bf16.gmra.mrb[0].mxu0 %v905
        %v2345 = vpop.f32.mrb[0].mxu0
        %v2346 = vadd.f32 0.0, %v2345
        %v2347 = vpop.f32.mrb[0].mxu0
        %v2348 = vpop.f32.mrb[0].mxu0
        %v2349 = vadd.f32 0.0, %v2348
        %v2350 = vpop.f32.mrb[0].mxu0
        %2351 = vmatprep.mubr.bf16.mxu0 0
        %2352 = vmatmul.mubr.bf16.gmra.mrb[0].mxu0 %v889
        %v2353 = vpop.f32.mrb[0].mxu0
        %v2354 = vadd.f32 0.0, %v2353
        %v2355 = vpop.f32.mrb[0].mxu0
        %v2356 = vpop.f32.mrb[0].mxu0
        %v2357 = vadd.f32 0.0, %v2356
        %v2358 = vpop.f32.mrb[0].mxu0
        %2359 = vdwg.mxu0
        %2360 = vmatprep.subr.bf16.mxu0 0
        %2361 = vmatpush1.bf16.msra.mxu0 %v2167
        %2362 = vmatprep.subr.bf16.mxu0 0
        %2363 = vmatpush1.bf16.msra.mxu0 %v2168
        %2364 = vmatprep.subr.bf16.mxu0 0
        %2365 = vmatpush1.bf16.msra.mxu0 %v2169
        %2366 = vmatprep.subr.bf16.mxu0 0
        %2367 = vmatpush1.bf16.msra.mxu0 %v2170
        %2368 = vmatprep.subr.bf16.mxu0 0
        %2369 = vmatpush1.bf16.msra.mxu0 %v2171
        %2370 = vmatprep.subr.bf16.mxu0 0
        %2371 = vmatpush1.bf16.msra.mxu0 %v2172
        %2372 = vmatprep.subr.bf16.mxu0 0
        %2373 = vmatpush1.bf16.msra.mxu0 %v2173
        %2374 = vmatprep.subr.bf16.mxu0 0
        %2375 = vmatpush1.bf16.msra.mxu0 %v2174
        %2376 = vmatprep.subr.bf16.mxu0 0
        %2377 = vmatpush1.bf16.msra.mxu0 0
        %2378 = vmatprep.subr.bf16.mxu0 0
        %2379 = vmatpush1.bf16.msra.mxu0 0
        %2380 = vmatprep.subr.bf16.mxu0 0
        %2381 = vmatpush1.bf16.msra.mxu0 0
        %2382 = vmatprep.subr.bf16.mxu0 0
        %2383 = vmatpush1.bf16.msra.mxu0 0
        %2384 = vmatprep.subr.bf16.mxu0 0
        %2385 = vmatpush1.bf16.msra.mxu0 0
        %2386 = vmatprep.subr.bf16.mxu0 0
        %2387 = vmatpush1.bf16.msra.mxu0 0
        %2388 = vmatprep.subr.bf16.mxu0 0
        %2389 = vmatpush1.bf16.msra.mxu0 0
        %2390 = vmatprep.subr.bf16.mxu0 0
        %2391 = vmatpush1.bf16.msra.mxu0 0
        %2392 = vmatprep.mubr.bf16.mxu0 0
        %2393 = vmatmul.mubr.bf16.gmra.mrb[0].mxu0 %v962
        %v2394 = vpop.f32.mrb[0].mxu0
        %v2395 = vadd.f32 %v2234, %v2394
        %v2396 = vpop.f32.mrb[0].mxu0
        %v2397 = vpop.f32.mrb[0].mxu0
        %v2398 = vadd.f32 %v2237, %v2397
        %v2399 = vpop.f32.mrb[0].mxu0
        %2400 = vmatprep.mubr.bf16.mxu0 0
        %2401 = vmatmul.mubr.bf16.gmra.mrb[0].mxu0 %v963
        %v2402 = vpop.f32.mrb[0].mxu0
        %v2403 = vadd.f32 %v2242, %v2402
        %v2404 = vpop.f32.mrb[0].mxu0
        %v2405 = vpop.f32.mrb[0].mxu0
        %v2406 = vadd.f32 %v2245, %v2405
        %v2407 = vpop.f32.mrb[0].mxu0
        %2408 = vmatprep.mubr.bf16.mxu0 0
        %2409 = vmatmul.mubr.bf16.gmra.mrb[0].mxu0 %v964
        %v2410 = vpop.f32.mrb[0].mxu0
        %v2411 = vadd.f32 %v2250, %v2410
        %v2412 = vpop.f32.mrb[0].mxu0
        %v2413 = vpop.f32.mrb[0].mxu0
        %v2414 = vadd.f32 %v2253, %v2413
        %v2415 = vpop.f32.mrb[0].mxu0
        %2416 = vmatprep.mubr.bf16.mxu0 0
        %2417 = vmatmul.mubr.bf16.gmra.mrb[0].mxu0 %v965
        %v2418 = vpop.f32.mrb[0].mxu0
        %v2419 = vadd.f32 %v2258, %v2418
        %v2420 = vpop.f32.mrb[0].mxu0
        %v2421 = vpop.f32.mrb[0].mxu0
        %v2422 = vadd.f32 %v2261, %v2421
        %v2423 = vpop.f32.mrb[0].mxu0
        %2424 = vmatprep.mubr.bf16.mxu0 0
        %2425 = vmatmul.mubr.bf16.gmra.mrb[0].mxu0 %v966
        %v2426 = vpop.f32.mrb[0].mxu0
        %v2427 = vadd.f32 %v2266, %v2426
        %v2428 = vpop.f32.mrb[0].mxu0
        %v2429 = vpop.f32.mrb[0].mxu0
        %v2430 = vadd.f32 %v2269, %v2429
        %v2431 = vpop.f32.mrb[0].mxu0
        %2432 = vmatprep.mubr.bf16.mxu0 0
        %2433 = vmatmul.mubr.bf16.gmra.mrb[0].mxu0 %v967
        %v2434 = vpop.f32.mrb[0].mxu0
        %v2435 = vadd.f32 %v2274, %v2434
        %v2436 = vpop.f32.mrb[0].mxu0
        %v2437 = vpop.f32.mrb[0].mxu0
        %v2438 = vadd.f32 %v2277, %v2437
        %v2439 = vpop.f32.mrb[0].mxu0
        %2440 = vmatprep.mubr.bf16.mxu0 0
        %2441 = vmatmul.mubr.bf16.gmra.mrb[0].mxu0 %v968
        %v2442 = vpop.f32.mrb[0].mxu0
        %v2443 = vadd.f32 %v2282, %v2442
        %v2444 = vpop.f32.mrb[0].mxu0
        %v2445 = vpop.f32.mrb[0].mxu0
        %v2446 = vadd.f32 %v2285, %v2445
        %v2447 = vpop.f32.mrb[0].mxu0
        %2448 = vmatprep.mubr.bf16.mxu0 0
        %2449 = vmatmul.mubr.bf16.gmra.mrb[0].mxu0 %v969
        %v2450 = vpop.f32.mrb[0].mxu0
        %v2451 = vadd.f32 %v2290, %v2450
        %v2452 = vpop.f32.mrb[0].mxu0
        %v2453 = vpop.f32.mrb[0].mxu0
        %v2454 = vadd.f32 %v2293, %v2453
        %v2455 = vpop.f32.mrb[0].mxu0
        %2456 = vmatprep.mubr.bf16.mxu0 0
        %2457 = vmatmul.mubr.bf16.gmra.mrb[0].mxu0 %v970
        %v2458 = vpop.f32.mrb[0].mxu0
        %v2459 = vadd.f32 %v2298, %v2458
        %v2460 = vpop.f32.mrb[0].mxu0
        %v2461 = vpop.f32.mrb[0].mxu0
        %v2462 = vadd.f32 %v2301, %v2461
        %v2463 = vpop.f32.mrb[0].mxu0
        %2464 = vmatprep.mubr.bf16.mxu0 0
        %2465 = vmatmul.mubr.bf16.gmra.mrb[0].mxu0 %v971
        %v2466 = vpop.f32.mrb[0].mxu0
        %v2467 = vadd.f32 %v2306, %v2466
        %v2468 = vpop.f32.mrb[0].mxu0
        %v2469 = vpop.f32.mrb[0].mxu0
        %v2470 = vadd.f32 %v2309, %v2469
        %v2471 = vpop.f32.mrb[0].mxu0
        %2472 = vmatprep.mubr.bf16.mxu0 0
        %2473 = vmatmul.mubr.bf16.gmra.mrb[0].mxu0 %v972
        %v2474 = vpop.f32.mrb[0].mxu0
        %v2475 = vadd.f32 %v2314, %v2474
        %v2476 = vpop.f32.mrb[0].mxu0
        %v2477 = vpop.f32.mrb[0].mxu0
        %v2478 = vadd.f32 %v2317, %v2477
        %v2479 = vpop.f32.mrb[0].mxu0
        %2480 = vmatprep.mubr.bf16.mxu0 0
        %2481 = vmatmul.mubr.bf16.gmra.mrb[0].mxu0 %v973
        %v2482 = vpop.f32.mrb[0].mxu0
        %v2483 = vadd.f32 %v2322, %v2482
        %v2484 = vpop.f32.mrb[0].mxu0
        %v2485 = vpop.f32.mrb[0].mxu0
        %v2486 = vadd.f32 %v2325, %v2485
        %v2487 = vpop.f32.mrb[0].mxu0
        %2488 = vmatprep.mubr.bf16.mxu0 0
        %2489 = vmatmul.mubr.bf16.gmra.mrb[0].mxu0 %v974
        %v2490 = vpop.f32.mrb[0].mxu0
        %v2491 = vadd.f32 %v2330, %v2490
        %v2492 = vpop.f32.mrb[0].mxu0
        %v2493 = vpop.f32.mrb[0].mxu0
        %v2494 = vadd.f32 %v2333, %v2493
        %v2495 = vpop.f32.mrb[0].mxu0
        %2496 = vmatprep.mubr.bf16.mxu0 0
        %2497 = vmatmul.mubr.bf16.gmra.mrb[0].mxu0 %v975
        %v2498 = vpop.f32.mrb[0].mxu0
        %v2499 = vadd.f32 %v2338, %v2498
        %v2500 = vpop.f32.mrb[0].mxu0
        %v2501 = vpop.f32.mrb[0].mxu0
        %v2502 = vadd.f32 %v2341, %v2501
        %v2503 = vpop.f32.mrb[0].mxu0
        %2504 = vmatprep.mubr.bf16.mxu0 0
        %2505 = vmatmul.mubr.bf16.gmra.mrb[0].mxu0 %v976
        %v2506 = vpop.f32.mrb[0].mxu0
        %v2507 = vadd.f32 %v2346, %v2506
        %v2508 = vpop.f32.mrb[0].mxu0
        %v2509 = vpop.f32.mrb[0].mxu0
        %v2510 = vadd.f32 %v2349, %v2509
        %v2511 = vpop.f32.mrb[0].mxu0
        %2512 = vmatprep.mubr.bf16.mxu0 0
        %2513 = vmatmul.mubr.bf16.gmra.mrb[0].mxu0 %v960
        %v2514 = vpop.f32.mrb[0].mxu0
        %v2515 = vadd.f32 %v2354, %v2514
        %v2516 = vpop.f32.mrb[0].mxu0
        %v2517 = vpop.f32.mrb[0].mxu0
        %v2518 = vadd.f32 %v2357, %v2517
        %v2519 = vpop.f32.mrb[0].mxu0
        %2520 = vdwg.mxu0
        %v2521 = vadd.f32 %v1880, %v2395
        %v2522 = vadd.f32 %v1883, %v2398
        %v2523 = vadd.f32 %v1888, %v2403
        %v2524 = vadd.f32 %v1891, %v2406
        %v2525 = vadd.f32 %v1896, %v2411
        %v2526 = vadd.f32 %v1899, %v2414
        %v2527 = vadd.f32 %v1904, %v2419
        %v2528 = vadd.f32 %v1907, %v2422
        %v2529 = vadd.f32 %v1912, %v2427
        %v2530 = vadd.f32 %v1915, %v2430
        %v2531 = vadd.f32 %v1920, %v2435
        %v2532 = vadd.f32 %v1923, %v2438
        %v2533 = vadd.f32 %v1928, %v2443
        %v2534 = vadd.f32 %v1931, %v2446
        %v2535 = vadd.f32 %v1936, %v2451
        %v2536 = vadd.f32 %v1939, %v2454
        %v2537 = vadd.f32 %v1944, %v2459
        %v2538 = vadd.f32 %v1947, %v2462
        %v2539 = vadd.f32 %v1952, %v2467
        %v2540 = vadd.f32 %v1955, %v2470
        %v2541 = vadd.f32 %v1960, %v2475
        %v2542 = vadd.f32 %v1963, %v2478
        %v2543 = vadd.f32 %v1968, %v2483
        %v2544 = vadd.f32 %v1971, %v2486
        %v2545 = vadd.f32 %v1976, %v2491
        %v2546 = vadd.f32 %v1979, %v2494
        %v2547 = vadd.f32 %v1984, %v2499
        %v2548 = vadd.f32 %v1987, %v2502
        %v2549 = vadd.f32 %v1992, %v2507
        %v2550 = vadd.f32 %v1995, %v2510
        %v2551 = vadd.f32 %v2000, %v2515
        %v2552 = vadd.f32 %v2003, %v2518
        %v2553 = vld [vmem:[%s4] sm:$0x1]
        %v2555 = vlaneseq
        %v2556 = vshrl.u32 %v2555, 7
        %v2557 = vsub.s32 0, %v2556
        %v2558 = vrot.slane %v2553, %v2557
        %v2560 = vadd.f32 %v2521, %v2558
        %v2561 = vadd.f32 %v2522, %v2558
        %v2562 = vadd.f32 %v2523, %v2558
        %v2563 = vadd.f32 %v2524, %v2558
        %v2564 = vadd.f32 %v2525, %v2558
        %v2565 = vadd.f32 %v2526, %v2558
        %v2566 = vadd.f32 %v2527, %v2558
        %v2567 = vadd.f32 %v2528, %v2558
        %v2568 = vadd.f32 %v2529, %v2558
        %v2569 = vadd.f32 %v2530, %v2558
        %v2570 = vadd.f32 %v2531, %v2558
        %v2571 = vadd.f32 %v2532, %v2558
        %v2572 = vadd.f32 %v2533, %v2558
        %v2573 = vadd.f32 %v2534, %v2558
        %v2574 = vadd.f32 %v2535, %v2558
        %v2575 = vadd.f32 %v2536, %v2558
        %v2576 = vadd.f32 %v2537, %v2558
        %v2577 = vadd.f32 %v2538, %v2558
        %v2578 = vadd.f32 %v2539, %v2558
        %v2579 = vadd.f32 %v2540, %v2558
        %v2580 = vadd.f32 %v2541, %v2558
        %v2581 = vadd.f32 %v2542, %v2558
        %v2582 = vadd.f32 %v2543, %v2558
        %v2583 = vadd.f32 %v2544, %v2558
        %v2584 = vadd.f32 %v2545, %v2558
        %v2585 = vadd.f32 %v2546, %v2558
        %v2586 = vadd.f32 %v2547, %v2558
        %v2587 = vadd.f32 %v2548, %v2558
        %v2588 = vadd.f32 %v2549, %v2558
        %v2589 = vadd.f32 %v2550, %v2558
        %v2590 = vadd.f32 %v2551, %v2558
        %v2591 = vadd.f32 %v2552, %v2558
        %v2592 = vmax.f32 %v2560, 0.0
        %v2593 = vmax.f32 %v2561, 0.0
        %v2594 = vmax.f32 %v2562, 0.0
        %v2595 = vmax.f32 %v2563, 0.0
        %v2596 = vmax.f32 %v2564, 0.0
        %v2597 = vmax.f32 %v2565, 0.0
        %v2598 = vmax.f32 %v2566, 0.0
        %v2599 = vmax.f32 %v2567, 0.0
        %v2600 = vmax.f32 %v2568, 0.0
        %v2601 = vmax.f32 %v2569, 0.0
        %v2602 = vmax.f32 %v2570, 0.0
        %v2603 = vmax.f32 %v2571, 0.0
        %v2604 = vmax.f32 %v2572, 0.0
        %v2605 = vmax.f32 %v2573, 0.0
        %v2606 = vmax.f32 %v2574, 0.0
        %v2607 = vmax.f32 %v2575, 0.0
        %v2608 = vmax.f32 %v2576, 0.0
        %v2609 = vmax.f32 %v2577, 0.0
        %v2610 = vmax.f32 %v2578, 0.0
        %v2611 = vmax.f32 %v2579, 0.0
        %v2612 = vmax.f32 %v2580, 0.0
        %v2613 = vmax.f32 %v2581, 0.0
        %v2614 = vmax.f32 %v2582, 0.0
        %v2615 = vmax.f32 %v2583, 0.0
        %v2616 = vmax.f32 %v2584, 0.0
        %v2617 = vmax.f32 %v2585, 0.0
        %v2618 = vmax.f32 %v2586, 0.0
        %v2619 = vmax.f32 %v2587, 0.0
        %v2620 = vmax.f32 %v2588, 0.0
        %v2621 = vmax.f32 %v2589, 0.0
        %v2622 = vmax.f32 %v2590, 0.0
        %v2623 = vmax.f32 %v2591, 0.0
        %v2624 = vpack.c.bf16 %v2593, %v2592
        %v2625 = vpack.c.bf16 %v2595, %v2594
        %v2626 = vpack.c.bf16 %v2597, %v2596
        %v2627 = vpack.c.bf16 %v2599, %v2598
        %v2628 = vpack.c.bf16 %v2601, %v2600
        %v2629 = vpack.c.bf16 %v2603, %v2602
        %v2630 = vpack.c.bf16 %v2605, %v2604
        %v2631 = vpack.c.bf16 %v2607, %v2606
        %v2632 = vpack.c.bf16 %v2609, %v2608
        %v2633 = vpack.c.bf16 %v2611, %v2610
        %v2634 = vpack.c.bf16 %v2613, %v2612
        %v2635 = vpack.c.bf16 %v2615, %v2614
        %v2636 = vpack.c.bf16 %v2617, %v2616
        %v2637 = vpack.c.bf16 %v2619, %v2618
        %v2638 = vpack.c.bf16 %v2621, %v2620
        %v2639 = vpack.c.bf16 %v2623, %v2622
        %v2640 = vld [vmem:[#allocation8] sm:$0xf]
        %v2641 = vld [vmem:[#allocation8 + $0x4] sm:$0xf]
        %v2642 = vld [vmem:[#allocation8 + $0x8] sm:$0xf]
        %v2643 = vld [vmem:[#allocation8 + $0xc] sm:$0xf]
        %v2644 = vld [vmem:[#allocation8 + $0x10] sm:$0xf]
        %v2645 = vld [vmem:[#allocation8 + $0x14] sm:$0xf]
        %v2646 = vld [vmem:[#allocation8 + $0x18] sm:$0xf]
        %v2647 = vld [vmem:[#allocation8 + $0x1c] sm:$0xf]
        %v2648 = vld [vmem:[#allocation8 + $0x20] sm:$0xf]
        %v2649 = vld [vmem:[#allocation8 + $0x24] sm:$0xf]
        %v2650 = vld [vmem:[#allocation8 + $0x28] sm:$0xf]
        %v2651 = vld [vmem:[#allocation8 + $0x2c] sm:$0xf]
        %v2652 = vld [vmem:[#allocation8 + $0x30] sm:$0xf]
        %v2653 = vld [vmem:[#allocation8 + $0x34] sm:$0xf]
        %v2654 = vld [vmem:[#allocation8 + $0x38] sm:$0xf]
        %v2655 = vld [vmem:[#allocation8 + $0x3c] sm:$0xf]
        %v2656 = vld [vmem:[%s6] sm:$0x1]
        %v2658 = vlaneseq
        %v2659 = vshrl.u32 %v2658, 7
        %v2660 = vsub.s32 0, %v2659
        %v2661 = vrot.slane %v2656, %v2660
        %v2679 = vunpack.c.l.b16 %v2640
        %v2680 = vunpack.c.l.b16 %v2641
        %v2681 = vunpack.c.l.b16 %v2642
        %v2682 = vunpack.c.l.b16 %v2643
        %v2683 = vunpack.c.l.b16 %v2644
        %v2684 = vunpack.c.l.b16 %v2645
        %v2685 = vunpack.c.l.b16 %v2646
        %v2686 = vunpack.c.l.b16 %v2647
        %v2687 = vunpack.c.l.b16 %v2648
        %v2688 = vunpack.c.l.b16 %v2649
        %v2689 = vunpack.c.l.b16 %v2650
        %v2690 = vunpack.c.l.b16 %v2651
        %v2691 = vunpack.c.l.b16 %v2652
        %v2692 = vunpack.c.l.b16 %v2653
        %v2693 = vunpack.c.l.b16 %v2654
        %v2694 = vunpack.c.l.b16 %v2655
        %v2695 = vpack.c.b16 %v2680, %v2679
        %v2696 = vpack.c.b16 %v2682, %v2681
        %v2697 = vpack.c.b16 %v2684, %v2683
        %v2698 = vpack.c.b16 %v2686, %v2685
        %v2699 = vpack.c.b16 %v2688, %v2687
        %v2700 = vpack.c.b16 %v2690, %v2689
        %v2701 = vpack.c.b16 %v2692, %v2691
        %v2702 = vpack.c.b16 %v2694, %v2693
        %2711 = vmatprep.subr.bf16.mxu0 0
        %2712 = vmatpush1.bf16.msra.mxu0 %v2695
        %2713 = vmatprep.subr.bf16.mxu0 0
        %2714 = vmatpush1.bf16.msra.mxu0 %v2696
        %2715 = vmatprep.subr.bf16.mxu0 0
        %2716 = vmatpush1.bf16.msra.mxu0 %v2697
        %2717 = vmatprep.subr.bf16.mxu0 0
        %2718 = vmatpush1.bf16.msra.mxu0 %v2698
        %2719 = vmatprep.subr.bf16.mxu0 0
        %2720 = vmatpush1.bf16.msra.mxu0 %v2699
        %2721 = vmatprep.subr.bf16.mxu0 0
        %2722 = vmatpush1.bf16.msra.mxu0 %v2700
        %2723 = vmatprep.subr.bf16.mxu0 0
        %2724 = vmatpush1.bf16.msra.mxu0 %v2701
        %2725 = vmatprep.subr.bf16.mxu0 0
        %2726 = vmatpush1.bf16.msra.mxu0 %v2702
        %2727 = vmatprep.subr.bf16.mxu0 0
        %2728 = vmatpush1.bf16.msra.mxu0 0
        %2729 = vmatprep.subr.bf16.mxu0 0
        %2730 = vmatpush1.bf16.msra.mxu0 0
        %2731 = vmatprep.subr.bf16.mxu0 0
        %2732 = vmatpush1.bf16.msra.mxu0 0
        %2733 = vmatprep.subr.bf16.mxu0 0
        %2734 = vmatpush1.bf16.msra.mxu0 0
        %2735 = vmatprep.subr.bf16.mxu0 0
        %2736 = vmatpush1.bf16.msra.mxu0 0
        %2737 = vmatprep.subr.bf16.mxu0 0
        %2738 = vmatpush1.bf16.msra.mxu0 0
        %2739 = vmatprep.subr.bf16.mxu0 0
        %2740 = vmatpush1.bf16.msra.mxu0 0
        %2741 = vmatprep.subr.bf16.mxu0 0
        %2742 = vmatpush1.bf16.msra.mxu0 0
        %2743 = vmatprep.mubr.bf16.mxu0 0
        %2744 = vmatmul.mubr.bf16.gmra.mrb[0].mxu0 %v2624
        %v2745 = vpop.f32.mrb[0].mxu0
        %v2746 = vadd.f32 %v2661, %v2745
        %v2747 = vpop.f32.mrb[0].mxu0
        %v2748 = vpop.f32.mrb[0].mxu0
        %v2749 = vadd.f32 %v2661, %v2748
        %v2750 = vpop.f32.mrb[0].mxu0
        %2751 = vmatprep.mubr.bf16.mxu0 0
        %2752 = vmatmul.mubr.bf16.gmra.mrb[0].mxu0 %v2625
        %v2753 = vpop.f32.mrb[0].mxu0
        %v2754 = vadd.f32 %v2661, %v2753
        %v2755 = vpop.f32.mrb[0].mxu0
        %v2756 = vpop.f32.mrb[0].mxu0
        %v2757 = vadd.f32 %v2661, %v2756
        %v2758 = vpop.f32.mrb[0].mxu0
        %2759 = vmatprep.mubr.bf16.mxu0 0
        %2760 = vmatmul.mubr.bf16.gmra.mrb[0].mxu0 %v2626
        %v2761 = vpop.f32.mrb[0].mxu0
        %v2762 = vadd.f32 %v2661, %v2761
        %v2763 = vpop.f32.mrb[0].mxu0
        %v2764 = vpop.f32.mrb[0].mxu0
        %v2765 = vadd.f32 %v2661, %v2764
        %v2766 = vpop.f32.mrb[0].mxu0
        %2767 = vmatprep.mubr.bf16.mxu0 0
        %2768 = vmatmul.mubr.bf16.gmra.mrb[0].mxu0 %v2627
        %v2769 = vpop.f32.mrb[0].mxu0
        %v2770 = vadd.f32 %v2661, %v2769
        %v2771 = vpop.f32.mrb[0].mxu0
        %v2772 = vpop.f32.mrb[0].mxu0
        %v2773 = vadd.f32 %v2661, %v2772
        %v2774 = vpop.f32.mrb[0].mxu0
        %2775 = vmatprep.mubr.bf16.mxu0 0
        %2776 = vmatmul.mubr.bf16.gmra.mrb[0].mxu0 %v2628
        %v2777 = vpop.f32.mrb[0].mxu0
        %v2778 = vadd.f32 %v2661, %v2777
        %v2779 = vpop.f32.mrb[0].mxu0
        %v2780 = vpop.f32.mrb[0].mxu0
        %v2781 = vadd.f32 %v2661, %v2780
        %v2782 = vpop.f32.mrb[0].mxu0
        %2783 = vmatprep.mubr.bf16.mxu0 0
        %2784 = vmatmul.mubr.bf16.gmra.mrb[0].mxu0 %v2629
        %v2785 = vpop.f32.mrb[0].mxu0
        %v2786 = vadd.f32 %v2661, %v2785
        %v2787 = vpop.f32.mrb[0].mxu0
        %v2788 = vpop.f32.mrb[0].mxu0
        %v2789 = vadd.f32 %v2661, %v2788
        %v2790 = vpop.f32.mrb[0].mxu0
        %2791 = vmatprep.mubr.bf16.mxu0 0
        %2792 = vmatmul.mubr.bf16.gmra.mrb[0].mxu0 %v2630
        %v2793 = vpop.f32.mrb[0].mxu0
        %v2794 = vadd.f32 %v2661, %v2793
        %v2795 = vpop.f32.mrb[0].mxu0
        %v2796 = vpop.f32.mrb[0].mxu0
        %v2797 = vadd.f32 %v2661, %v2796
        %v2798 = vpop.f32.mrb[0].mxu0
        %2799 = vmatprep.mubr.bf16.mxu0 0
        %2800 = vmatmul.mubr.bf16.gmra.mrb[0].mxu0 %v2631
        %v2801 = vpop.f32.mrb[0].mxu0
        %v2802 = vadd.f32 %v2661, %v2801
        %v2803 = vpop.f32.mrb[0].mxu0
        %v2804 = vpop.f32.mrb[0].mxu0
        %v2805 = vadd.f32 %v2661, %v2804
        %v2806 = vpop.f32.mrb[0].mxu0
        %2807 = vmatprep.mubr.bf16.mxu0 0
        %2808 = vmatmul.mubr.bf16.gmra.mrb[0].mxu0 %v2632
        %v2809 = vpop.f32.mrb[0].mxu0
        %v2810 = vadd.f32 %v2661, %v2809
        %v2811 = vpop.f32.mrb[0].mxu0
        %v2812 = vpop.f32.mrb[0].mxu0
        %v2813 = vadd.f32 %v2661, %v2812
        %v2814 = vpop.f32.mrb[0].mxu0
        %2815 = vmatprep.mubr.bf16.mxu0 0
        %2816 = vmatmul.mubr.bf16.gmra.mrb[0].mxu0 %v2633
        %v2817 = vpop.f32.mrb[0].mxu0
        %v2818 = vadd.f32 %v2661, %v2817
        %v2819 = vpop.f32.mrb[0].mxu0
        %v2820 = vpop.f32.mrb[0].mxu0
        %v2821 = vadd.f32 %v2661, %v2820
        %v2822 = vpop.f32.mrb[0].mxu0
        %2823 = vmatprep.mubr.bf16.mxu0 0
        %2824 = vmatmul.mubr.bf16.gmra.mrb[0].mxu0 %v2634
        %v2825 = vpop.f32.mrb[0].mxu0
        %v2826 = vadd.f32 %v2661, %v2825
        %v2827 = vpop.f32.mrb[0].mxu0
        %v2828 = vpop.f32.mrb[0].mxu0
        %v2829 = vadd.f32 %v2661, %v2828
        %v2830 = vpop.f32.mrb[0].mxu0
        %2831 = vmatprep.mubr.bf16.mxu0 0
        %2832 = vmatmul.mubr.bf16.gmra.mrb[0].mxu0 %v2635
        %v2833 = vpop.f32.mrb[0].mxu0
        %v2834 = vadd.f32 %v2661, %v2833
        %v2835 = vpop.f32.mrb[0].mxu0
        %v2836 = vpop.f32.mrb[0].mxu0
        %v2837 = vadd.f32 %v2661, %v2836
        %v2838 = vpop.f32.mrb[0].mxu0
        %2839 = vmatprep.mubr.bf16.mxu0 0
        %2840 = vmatmul.mubr.bf16.gmra.mrb[0].mxu0 %v2636
        %v2841 = vpop.f32.mrb[0].mxu0
        %v2842 = vadd.f32 %v2661, %v2841
        %v2843 = vpop.f32.mrb[0].mxu0
        %v2844 = vpop.f32.mrb[0].mxu0
        %v2845 = vadd.f32 %v2661, %v2844
        %v2846 = vpop.f32.mrb[0].mxu0
        %2847 = vmatprep.mubr.bf16.mxu0 0
        %2848 = vmatmul.mubr.bf16.gmra.mrb[0].mxu0 %v2637
        %v2849 = vpop.f32.mrb[0].mxu0
        %v2850 = vadd.f32 %v2661, %v2849
        %v2851 = vpop.f32.mrb[0].mxu0
        %v2852 = vpop.f32.mrb[0].mxu0
        %v2853 = vadd.f32 %v2661, %v2852
        %v2854 = vpop.f32.mrb[0].mxu0
        %2855 = vmatprep.mubr.bf16.mxu0 0
        %2856 = vmatmul.mubr.bf16.gmra.mrb[0].mxu0 %v2638
        %v2857 = vpop.f32.mrb[0].mxu0
        %v2858 = vadd.f32 %v2661, %v2857
        %v2859 = vpop.f32.mrb[0].mxu0
        %v2860 = vpop.f32.mrb[0].mxu0
        %v2861 = vadd.f32 %v2661, %v2860
        %v2862 = vpop.f32.mrb[0].mxu0
        %2863 = vmatprep.mubr.bf16.mxu0 0
        %2864 = vmatmul.mubr.bf16.gmra.mrb[0].mxu0 %v2639
        %v2865 = vpop.f32.mrb[0].mxu0
        %v2866 = vadd.f32 %v2661, %v2865
        %v2867 = vpop.f32.mrb[0].mxu0
        %v2868 = vpop.f32.mrb[0].mxu0
        %v2869 = vadd.f32 %v2661, %v2868
        %v2870 = vpop.f32.mrb[0].mxu0
        %2871 = vdwg.mxu0
        %v2872 = vunpack.c.l.bf16 %v342
        %v2873 = vunpack.c.l.bf16 %v343
        %v2874 = vunpack.c.l.bf16 %v344
        %v2875 = vunpack.c.l.bf16 %v345
        %v2876 = vunpack.c.l.bf16 %v346
        %v2877 = vunpack.c.l.bf16 %v347
        %v2878 = vunpack.c.l.bf16 %v348
        %v2879 = vunpack.c.l.bf16 %v349
        %v2880 = vunpack.c.l.bf16 %v350
        %v2881 = vunpack.c.l.bf16 %v351
        %v2882 = vunpack.c.l.bf16 %v352
        %v2883 = vunpack.c.l.bf16 %v353
        %v2884 = vunpack.c.l.bf16 %v354
        %v2885 = vunpack.c.l.bf16 %v355
        %v2886 = vunpack.c.l.bf16 %v356
        %v2887 = vunpack.c.l.bf16 %v357
        %v2888 = vunpack.c.l.bf16 %v358
        %v2889 = vunpack.c.l.bf16 %v359
        %v2890 = vunpack.c.l.bf16 %v360
        %v2891 = vunpack.c.l.bf16 %v361
        %v2892 = vunpack.c.l.bf16 %v362
        %v2893 = vunpack.c.l.bf16 %v363
        %v2894 = vunpack.c.l.bf16 %v364
        %v2895 = vunpack.c.l.bf16 %v365
        %v2896 = vunpack.c.l.bf16 %v366
        %v2897 = vunpack.c.l.bf16 %v367
        %v2898 = vunpack.c.l.bf16 %v368
        %v2899 = vunpack.c.l.bf16 %v369
        %v2900 = vunpack.c.l.bf16 %v370
        %v2901 = vunpack.c.l.bf16 %v371
        %v2902 = vunpack.c.l.bf16 %v372
        %v2903 = vunpack.c.l.bf16 %v373
        %v2904 = vadd.f32 %v2746, %v2872
        %v2905 = vadd.f32 %v2749, %v2873
        %v2906 = vadd.f32 %v2754, %v2874
        %v2907 = vadd.f32 %v2757, %v2875
        %v2908 = vadd.f32 %v2762, %v2876
        %v2909 = vadd.f32 %v2765, %v2877
        %v2910 = vadd.f32 %v2770, %v2878
        %v2911 = vadd.f32 %v2773, %v2879
        %v2912 = vadd.f32 %v2778, %v2880
        %v2913 = vadd.f32 %v2781, %v2881
        %v2914 = vadd.f32 %v2786, %v2882
        %v2915 = vadd.f32 %v2789, %v2883
        %v2916 = vadd.f32 %v2794, %v2884
        %v2917 = vadd.f32 %v2797, %v2885
        %v2918 = vadd.f32 %v2802, %v2886
        %v2919 = vadd.f32 %v2805, %v2887
        %v2920 = vadd.f32 %v2810, %v2888
        %v2921 = vadd.f32 %v2813, %v2889
        %v2922 = vadd.f32 %v2818, %v2890
        %v2923 = vadd.f32 %v2821, %v2891
        %v2924 = vadd.f32 %v2826, %v2892
        %v2925 = vadd.f32 %v2829, %v2893
        %v2926 = vadd.f32 %v2834, %v2894
        %v2927 = vadd.f32 %v2837, %v2895
        %v2928 = vadd.f32 %v2842, %v2896
        %v2929 = vadd.f32 %v2845, %v2897
        %v2930 = vadd.f32 %v2850, %v2898
        %v2931 = vadd.f32 %v2853, %v2899
        %v2932 = vadd.f32 %v2858, %v2900
        %v2933 = vadd.f32 %v2861, %v2901
        %v2934 = vadd.f32 %v2866, %v2902
        %v2935 = vadd.f32 %v2869, %v2903
        %v2936 = vmax.f32 %v2904, 0.0
        %v2937 = vmax.f32 %v2905, 0.0
        %v2938 = vmax.f32 %v2906, 0.0
        %v2939 = vmax.f32 %v2907, 0.0
        %v2940 = vmax.f32 %v2908, 0.0
        %v2941 = vmax.f32 %v2909, 0.0
        %v2942 = vmax.f32 %v2910, 0.0
        %v2943 = vmax.f32 %v2911, 0.0
        %v2944 = vmax.f32 %v2912, 0.0
        %v2945 = vmax.f32 %v2913, 0.0
        %v2946 = vmax.f32 %v2914, 0.0
        %v2947 = vmax.f32 %v2915, 0.0
        %v2948 = vmax.f32 %v2916, 0.0
        %v2949 = vmax.f32 %v2917, 0.0
        %v2950 = vmax.f32 %v2918, 0.0
        %v2951 = vmax.f32 %v2919, 0.0
        %v2952 = vmax.f32 %v2920, 0.0
        %v2953 = vmax.f32 %v2921, 0.0
        %v2954 = vmax.f32 %v2922, 0.0
        %v2955 = vmax.f32 %v2923, 0.0
        %v2956 = vmax.f32 %v2924, 0.0
        %v2957 = vmax.f32 %v2925, 0.0
        %v2958 = vmax.f32 %v2926, 0.0
        %v2959 = vmax.f32 %v2927, 0.0
        %v2960 = vmax.f32 %v2928, 0.0
        %v2961 = vmax.f32 %v2929, 0.0
        %v2962 = vmax.f32 %v2930, 0.0
        %v2963 = vmax.f32 %v2931, 0.0
        %v2964 = vmax.f32 %v2932, 0.0
        %v2965 = vmax.f32 %v2933, 0.0
        %v2966 = vmax.f32 %v2934, 0.0
        %v2967 = vmax.f32 %v2935, 0.0
        %v2968 = vpack.c.bf16 %v2937, %v2936
        %v2969 = vpack.c.bf16 %v2939, %v2938
        %v2970 = vpack.c.bf16 %v2941, %v2940
        %v2971 = vpack.c.bf16 %v2943, %v2942
        %v2972 = vpack.c.bf16 %v2945, %v2944
        %v2973 = vpack.c.bf16 %v2947, %v2946
        %v2974 = vpack.c.bf16 %v2949, %v2948
        %v2975 = vpack.c.bf16 %v2951, %v2950
        %v2976 = vpack.c.bf16 %v2953, %v2952
        %v2977 = vpack.c.bf16 %v2955, %v2954
        %v2978 = vpack.c.bf16 %v2957, %v2956
        %v2979 = vpack.c.bf16 %v2959, %v2958
        %v2980 = vpack.c.bf16 %v2961, %v2960
        %v2981 = vpack.c.bf16 %v2963, %v2962
        %v2982 = vpack.c.bf16 %v2965, %v2964
        %v2983 = vpack.c.bf16 %v2967, %v2966
        %v3000 = vunpack.c.l.b16 %v2968
        %v3001 = vunpack.c.h.b16 %v2968
        %v3002 = vunpack.c.l.b16 %v2969
        %v3003 = vunpack.c.h.b16 %v2969
        %v3004 = vunpack.c.l.b16 %v2970
        %v3005 = vunpack.c.h.b16 %v2970
        %v3006 = vunpack.c.l.b16 %v2971
        %v3007 = vunpack.c.h.b16 %v2971
        %v3008 = vunpack.c.l.b16 %v2972
        %v3009 = vunpack.c.h.b16 %v2972
        %v3010 = vunpack.c.l.b16 %v2973
        %v3011 = vunpack.c.h.b16 %v2973
        %v3012 = vunpack.c.l.b16 %v2974
        %v3013 = vunpack.c.h.b16 %v2974
        %v3014 = vunpack.c.l.b16 %v2975
        %v3015 = vunpack.c.h.b16 %v2975
        %v3016 = vunpack.c.l.b16 %v2976
        %v3017 = vunpack.c.h.b16 %v2976
        %v3018 = vunpack.c.l.b16 %v2977
        %v3019 = vunpack.c.h.b16 %v2977
        %v3020 = vunpack.c.l.b16 %v2978
        %v3021 = vunpack.c.h.b16 %v2978
        %v3022 = vunpack.c.l.b16 %v2979
        %v3023 = vunpack.c.h.b16 %v2979
        %v3024 = vunpack.c.l.b16 %v2980
        %v3025 = vunpack.c.h.b16 %v2980
        %v3026 = vunpack.c.l.b16 %v2981
        %v3027 = vunpack.c.h.b16 %v2981
        %v3028 = vunpack.c.l.b16 %v2982
        %v3029 = vunpack.c.h.b16 %v2982
        %v3030 = vunpack.c.l.b16 %v2983
        %v3031 = vunpack.c.h.b16 %v2983
        %v3032 = vpack.c.b16 %v3000, %v3000
        %v3033 = vpack.c.b16 %v3001, %v3001
        %v3034 = vpack.c.b16 %v3002, %v3002
        %v3035 = vpack.c.b16 %v3003, %v3003
        %v3036 = vpack.c.b16 %v3004, %v3004
        %v3037 = vpack.c.b16 %v3005, %v3005
        %v3038 = vpack.c.b16 %v3006, %v3006
        %v3039 = vpack.c.b16 %v3007, %v3007
        %v3040 = vpack.c.b16 %v3008, %v3008
        %v3041 = vpack.c.b16 %v3009, %v3009
        %v3042 = vpack.c.b16 %v3010, %v3010
        %v3043 = vpack.c.b16 %v3011, %v3011
        %v3044 = vpack.c.b16 %v3012, %v3012
        %v3045 = vpack.c.b16 %v3013, %v3013
        %v3046 = vpack.c.b16 %v3014, %v3014
        %v3047 = vpack.c.b16 %v3015, %v3015
        %v3048 = vpack.c.b16 %v3016, %v3016
        %v3049 = vpack.c.b16 %v3017, %v3017
        %v3050 = vpack.c.b16 %v3018, %v3018
        %v3051 = vpack.c.b16 %v3019, %v3019
        %v3052 = vpack.c.b16 %v3020, %v3020
        %v3053 = vpack.c.b16 %v3021, %v3021
        %v3054 = vpack.c.b16 %v3022, %v3022
        %v3055 = vpack.c.b16 %v3023, %v3023
        %v3056 = vpack.c.b16 %v3024, %v3024
        %v3057 = vpack.c.b16 %v3025, %v3025
        %v3058 = vpack.c.b16 %v3026, %v3026
        %v3059 = vpack.c.b16 %v3027, %v3027
        %v3060 = vpack.c.b16 %v3028, %v3028
        %v3061 = vpack.c.b16 %v3029, %v3029
        %v3062 = vpack.c.b16 %v3030, %v3030
        %v3063 = vpack.c.b16 %v3031, %v3031
        %3096 = vst [vmem:[%s340] sm:$0xf] %v3032
        %3097 = vst [vmem:[%s340 + $0x4] sm:$0xf] %v3033
        %3098 = vst [vmem:[%s340 + $0x8] sm:$0xf] %v3034
        %3099 = vst [vmem:[%s340 + $0xc] sm:$0xf] %v3035
        %3100 = vst [vmem:[%s340 + $0x10] sm:$0xf] %v3036
        %3101 = vst [vmem:[%s340 + $0x14] sm:$0xf] %v3037
        %3102 = vst [vmem:[%s340 + $0x18] sm:$0xf] %v3038
        %3103 = vst [vmem:[%s340 + $0x1c] sm:$0xf] %v3039
        %3104 = vst [vmem:[%s340 + $0x20] sm:$0xf] %v3040
        %3105 = vst [vmem:[%s340 + $0x24] sm:$0xf] %v3041
        %3106 = vst [vmem:[%s340 + $0x28] sm:$0xf] %v3042
        %3107 = vst [vmem:[%s340 + $0x2c] sm:$0xf] %v3043
        %3108 = vst [vmem:[%s340 + $0x30] sm:$0xf] %v3044
        %3109 = vst [vmem:[%s340 + $0x34] sm:$0xf] %v3045
        %3110 = vst [vmem:[%s340 + $0x38] sm:$0xf] %v3046
        %3111 = vst [vmem:[%s340 + $0x3c] sm:$0xf] %v3047
        %3112 = vst [vmem:[%s340 + $0x40] sm:$0xf] %v3048
        %3113 = vst [vmem:[%s340 + $0x44] sm:$0xf] %v3049
        %3114 = vst [vmem:[%s340 + $0x48] sm:$0xf] %v3050
        %3115 = vst [vmem:[%s340 + $0x4c] sm:$0xf] %v3051
        %3116 = vst [vmem:[%s340 + $0x50] sm:$0xf] %v3052
        %3117 = vst [vmem:[%s340 + $0x54] sm:$0xf] %v3053
        %3118 = vst [vmem:[%s340 + $0x58] sm:$0xf] %v3054
        %3119 = vst [vmem:[%s340 + $0x5c] sm:$0xf] %v3055
        %3120 = vst [vmem:[%s340 + $0x60] sm:$0xf] %v3056
        %3121 = vst [vmem:[%s340 + $0x64] sm:$0xf] %v3057
        %3122 = vst [vmem:[%s340 + $0x68] sm:$0xf] %v3058
        %3123 = vst [vmem:[%s340 + $0x6c] sm:$0xf] %v3059
        %3124 = vst [vmem:[%s340 + $0x70] sm:$0xf] %v3060
        %3125 = vst [vmem:[%s340 + $0x74] sm:$0xf] %v3061
        %3126 = vst [vmem:[%s340 + $0x78] sm:$0xf] %v3062
        %3127 = vst [vmem:[%s340 + $0x7c] sm:$0xf] %v3063
        %s3128 = sand.u32 %s186, 1
        %s3129 = scalar_lea.sflag [#allocation4], %s3128
        %s3130 = sand.u32 %s186, 1
        %s3131 = smul.addr %s3130, 128
        %s3132 = scalar_lea.vmem [#allocation10], %s3131
        // Predicated region
        $region65: #{tpu_custom_call.1} parent=47 // pred_check
          %p3133 = pneg %p196
        $region66: #{tpu_custom_call.1} parent=47 // pred_check_branch
          %3135 = sbr.rel (%p3133) target = $region68
        $region67: #{tpu_custom_call.1} parent=47 // pred_region
          %s3137 = ssub.s32 2048, 2048
          %3138 = vsyncadd %s3129, %s3137
          %s3139 = smul.addr %s26, 32
          %s3140 = smul.addr %s3139, 64
          %s3141 = scalar_lea.hbm %s7, %s3140
          %s3142 = sshll.u32 %s3132, 4
          %s3143 = int_to_ptr.vmem [resolvable:$true] %s3142
          %3148 = dma.vmem_to_hbm [thread:$0]  %s3143, 2048, %s3141, %s3129, 64, 64, 4
        $region68: #{tpu_custom_call.1} parent=47 // pred_fallthru
          _
      $region48: #{tpu_custom_call.1} parent=5 // pred_fallthru
        _
      %p3149 = scmp.le.s32.totalorder 2, %s21
      // Predicated region
      $region69: #{tpu_custom_call.1} parent=5 // pred_check
        %p3150 = pneg %p3149
      $region70: #{tpu_custom_call.1} parent=5 // pred_check_branch
        %3152 = sbr.rel (%p3150) target = $region72
      $region71: #{tpu_custom_call.1} parent=5 // pred_region
        %s3153 = ssub.s32 %s21, 2
        // Predicated region
        $region73: #{tpu_custom_call.1} parent=71 // pred_check
          %p3154 = pneg %p202
        $region74: #{tpu_custom_call.1} parent=71 // pred_check_branch
          %3156 = sbr.rel (%p3154) target = $region76
        $region75: #{tpu_custom_call.1} parent=71 // pred_region
          %s3157 = sand.u32 %s187, 1
          %s3158 = scalar_lea.sflag [#allocation4], %s3157
          %s3159 = sand.u32 %s187, 1
          %s3160 = smul.addr %s3159, 128
          %s3161 = scalar_lea.vmem [#allocation10], %s3160
          %3162 = dma.done %s3158, 2048
        $region76: #{tpu_custom_call.1} parent=71 // pred_fallthru
          _
      $region72: #{tpu_custom_call.1} parent=5 // pred_fallthru
        _
    $region6: #{tpu_custom_call.1} parent=1 // loop_footer
      %s25 = sadd.s32 1, %s21
    $region7: #{tpu_custom_call.1} parent=1 // loop_footer_branch
      %20 = sbr.rel target = $region3
    $region8: #{tpu_custom_call.1} parent=1 // loop_exit
      _
    %3163 = vsyncpa [#allocation3], 1
    %s3164 = scalar_lea.sflag [#allocation3], 1
    %3165 = vsyncpa %s3164, 1
    %3166 = vsyncpa [#allocation6], 1
    %3167 = vsyncpa [#allocation9], 1
    %3168 = vsyncpa [#allocation4], 1
    %s3169 = scalar_lea.sflag [#allocation4], 1
    %3170 = vsyncpa %s3169, 1

</llo_original>
